<compile_context>
chip_gen: v6e
topology: v6e:2x2x1
jax: 0.10.0
libtpu: 0.0.40
codegen_flags: <defaults>
</compile_context>

<pallas_src>
import functools

import jax
import jax.numpy as jnp
from jax import lax
from jax.experimental import pallas as pl
from jax.experimental.pallas import tpu as pltpu
import numpy as np

MIN_STD = 1e-4


# ----------------------------- Pallas kernel --------------------------------
def plan_recognition_kernel(
    x_ref,       # (T*Bp, D)   time-major flattened input
    wih0_ref,    # (D, 2H)     [Wih0_fwd | Wih0_rev]
    b0_ref,      # (1, 2H)     [b0_fwd  | b0_rev]   (b_ih + b_hh folded)
    whh0_ref,    # (2H, 2H)    blockdiag(Whh0_fwd, Whh0_rev)
    wih1_ref,    # (2H, 2H)    [Wih1_fwd | Wih1_rev]
    b1_ref,      # (1, 2H)     [b1_fwd  | b1_rev]
    whh1_ref,    # (2H, 2H)    blockdiag(Whh1_fwd, 0)
    whead_ref,   # (2H, Lpad)  [Wmean | Wvar | 0]
    bhead_ref,   # (1, Lpad)   [bmean | bvar | 0]
    out_ref,     # (Bp, Lpad)  packed [mean | var->std | junk]
    zbuf,        # scratch VMEM (T*Bp, 2H): holds z0, then out0
    hbuf,        # scratch VMEM (T*Bp, 2H): holds layer-0 states, then z1
    *,
    latent_dim,
    min_std,
):
    f32 = jnp.float32
    Bp = out_ref.shape[0]
    H2 = whh0_ref.shape[0]
    H = H2 // 2
    T = x_ref.shape[0] // Bp

    def mm(a, b):
        return jnp.dot(a, b, preferred_element_type=f32)

    # lane mask: True in forward-direction lanes [0, H)   (hoisted, reused)
    fwd_lane = lax.broadcasted_iota(jnp.int32, (Bp, H2), 1) < H

    # ---- layer 0: hoisted input projection (both directions), one matmul ----
    # zbuf row-block t = [x[t] @ Wih0f + b0f | x[t] @ Wih0r + b0r]
    zbuf[...] = mm(x_ref[...], wih0_ref[...]) + b0_ref[...]

    # ---- layer 0: fused fwd/rev recurrence via block-diagonal W_hh ----------
    # h_cat[:, :H] = fwd state at time i, h_cat[:, H:] = rev state at T-1-i.
    whh0 = whh0_ref[...]
    h_cat = jnp.zeros((Bp, H2), f32)
    for i in range(T):                               # fully unrolled (T static)
        z_i = zbuf[pl.ds(i * Bp, Bp), :]             # [x[i]@Wf     | x[i]@Wr    ]
        z_r = zbuf[pl.ds((T - 1 - i) * Bp, Bp), :]   # [x[T-1-i]@Wf | x[T-1-i]@Wr]
        z_step = jnp.where(fwd_lane, z_i, z_r)       # [x[i]@Wf | x[T-1-i]@Wr]
        h_cat = jnp.maximum(z_step + mm(h_cat, whh0), 0.0)
        hbuf[pl.ds(i * Bp, Bp), :] = h_cat           # bound live range

    # ---- reassemble layer-1 input: out0[t] = [fwd(t) | rev(t)] --------------
    # fwd(t) lives in hbuf[t][:, :H]; rev(t) lives in hbuf[T-1-t][:, H:].
    for t in range(T):
        a = hbuf[pl.ds(t * Bp, Bp), :]
        b = hbuf[pl.ds((T - 1 - t) * Bp, Bp), :]
        zbuf[pl.ds(t * Bp, Bp), :] = jnp.where(fwd_lane, a, b)

    # ---- layer 1: hoisted input projection (fwd & rev fused), one matmul ----
    hbuf[...] = mm(zbuf[...], wih1_ref[...]) + b1_ref[...]          # z1

    # ---- layer 1 recurrence: fwd chain; rev first step rides the rev lanes --
    # whh1 = blockdiag(Whh1f, 0): rev lanes carry relu(z1_rev[t]) each step,
    # which at t = T-1 is exactly the reverse-direction output at the last
    # time step (its recurrence starts there from h0 = 0).
    whh1 = whh1_ref[...]
    h1 = jnp.zeros((Bp, H2), f32)
    for t in range(T):                               # fully unrolled
        h1 = jnp.maximum(hbuf[pl.ds(t * Bp, Bp), :] + mm(h1, whh1), 0.0)
    # h1 == [h1_fwd(T-1) | h1_rev(T-1)] == x[:, -1] of the bidirectional RNN.

    # ---- fused mean/variance heads (lane-dense, full-tile store) ------------
    head = mm(h1, whead_ref[...]) + bhead_ref[...]                  # (Bp, Lpad)
    col = lax.broadcasted_iota(jnp.int32, head.shape, 1)
    soft = (jnp.maximum(head, 0.0)
            + jnp.log(1.0 + jnp.exp(-jnp.abs(head))) + min_std)
    # cols [0, L) -> mean (identity); cols [L, 2L) -> softplus + min_std;
    # cols >= 2L are padding junk, sliced away by the wrapper.
    out_ref[...] = jnp.where(col >= latent_dim, soft, head)


# ----------------------------- weight packing --------------------------------
def _blockdiag(a, b):
    ra, ca = a.shape
    rb, cb = b.shape
    top = jnp.concatenate([a, jnp.zeros((ra, cb), a.dtype)], axis=1)
    bot = jnp.concatenate([jnp.zeros((rb, ca), b.dtype), b], axis=1)
    return jnp.concatenate([top, bot], axis=0)


def pack_params(params):
    """One-time layout plumbing: call ONCE at init, not per forward call."""
    H = params["whh0f"].shape[0]
    L = params["wm"].shape[1]
    Lpad = ((2 * L + 127) // 128) * 128          # lane-dense head output
    f32 = jnp.float32
    packed = {
        "wih0": jnp.concatenate([params["wih0f"], params["wih0r"]], axis=1),
        "b0":   jnp.concatenate([params["b0f"], params["b0r"]], axis=1),
        "whh0": _blockdiag(params["whh0f"], params["whh0r"]),
        "wih1": jnp.concatenate([params["wih1f"], params["wih1r"]], axis=1),
        "b1":   jnp.concatenate([params["b1f"], params["b1r"]], axis=1),
        "whh1": _blockdiag(params["whh1f"], jnp.zeros((H, H), f32)),
        "whead": jnp.pad(
            jnp.concatenate([params["wm"], params["wv"]], axis=1),
            ((0, 0), (0, Lpad - 2 * L))),
        "bhead": jnp.pad(
            jnp.concatenate([params["bm"], params["bv"]], axis=1),
            ((0, 0), (0, Lpad - 2 * L))),
    }
    return {k: jnp.asarray(v, f32) for k, v in packed.items()}


# ------------------------------ forward wrapper ------------------------------
def plan_recognition_forward(perceptual_emb, packed, *, latent_dim,
                             min_std=MIN_STD):
    """perceptual_emb: (B, T, D) batch-first, like the PyTorch module.
    `packed` must come from pack_params() (called once at init)."""
    B, T, D = perceptual_emb.shape
    H2 = packed["whh0"].shape[0]
    Lpad = packed["whead"].shape[1]
    f32 = jnp.float32

    # Pad batch to a full sublane tile so every in-kernel block is aligned.
    Bp = max(8, ((B + 7) // 8) * 8)
    x_tm = jnp.transpose(perceptual_emb.astype(f32), (1, 0, 2))    # (T, B, D)
    x_tm = jnp.pad(x_tm, ((0, 0), (0, Bp - B), (0, 0)))            # (T, Bp, D)
    x_flat = x_tm.reshape(T * Bp, D)

    kernel = functools.partial(plan_recognition_kernel,
                               latent_dim=latent_dim, min_std=min_std)
    vmem = pl.BlockSpec(memory_space=pltpu.MemorySpace.VMEM)
    inputs = (x_flat, packed["wih0"], packed["b0"], packed["whh0"],
              packed["wih1"], packed["b1"], packed["whh1"],
              packed["whead"], packed["bhead"])

    out = pl.pallas_call(
        kernel,
        out_shape=jax.ShapeDtypeStruct((Bp, Lpad), f32),
        in_specs=[vmem] * len(inputs),
        out_specs=vmem,
        scratch_shapes=[pltpu.VMEM((T * Bp, H2), f32),
                        pltpu.VMEM((T * Bp, H2), f32)],
    )(*inputs)

    mean = out[:B, :latent_dim]
    std = out[:B, latent_dim:2 * latent_dim]
    return mean, std


# ------------------------- pure-JAX reference --------------------------------
def reference_forward(x, p):
    B, T, D = x.shape
    H = p["whh0f"].shape[0]

    def run_dir(inp, wih, whh, b, reverse):
        Tn = inp.shape[1]
        h = jnp.zeros((B, H), jnp.float32)
        outs = [None] * Tn
        order = range(Tn - 1, -1, -1) if reverse else range(Tn)
        for t in order:
            h = jax.nn.relu(inp[:, t] @ wih + b + h @ whh)
            outs[t] = h
        return jnp.stack(outs, axis=1)  # (B, T, H)

    o0f = run_dir(x, p["wih0f"], p["whh0f"], p["b0f"][0], reverse=False)
    o0r = run_dir(x, p["wih0r"], p["whh0r"], p["b0r"][0], reverse=True)
    o0 = jnp.concatenate([o0f, o0r], axis=-1)                  # (B, T, 2H)
    o1f = run_dir(o0, p["wih1f"], p["whh1f"], p["b1f"][0], reverse=False)
    h1r_last = jax.nn.relu(o0[:, -1] @ p["wih1r"] + p["b1r"][0])
    x_last = jnp.concatenate([o1f[:, -1], h1r_last], axis=-1)  # (B, 2H)
    mean = x_last @ p["wm"] + p["bm"][0]
    var = x_last @ p["wv"] + p["bv"][0]
    std = jax.nn.softplus(var) + MIN_STD
    return mean, std


# ------------------------- parameter initialization --------------------------
def init_params(key, state_dim, hidden_dim, latent_plan_dim):
    D, H, L = state_dim, hidden_dim, latent_plan_dim
    scale = 1.0 / np.sqrt(H)

    shapes = {
        # layer 0 (input size D); biases hold b_ih + b_hh combined
        "wih0f": (D, H), "whh0f": (H, H), "b0f": (1, H),
        "wih0r": (D, H), "whh0r": (H, H), "b0r": (1, H),
        # layer 1 (input size 2H = concat of both directions of layer 0)
        "wih1f": (2 * H, H), "whh1f": (H, H), "b1f": (1, H),
        "wih1r": (2 * H, H), "b1r": (1, H),
        # heads
        "wm": (2 * H, L), "bm": (1, L),
        "wv": (2 * H, L), "bv": (1, L),
    }
    params = {}
    keys = jax.random.split(key, len(shapes))
    for k_rng, (name, shp) in zip(keys, sorted(shapes.items())):
        params[name] = jax.random.uniform(
            k_rng, shp, jnp.float32, minval=-scale, maxval=scale
        )
    return params


if __name__ == "__main__":
    # Small shapes consistent with the module's forward:
    #   perceptual_emb: (batch, seq, state_dim)
    B, T, D = 2, 8, 32
    H, L = 64, 16  # hidden_dim, latent_plan_dim

    root = jax.random.PRNGKey(0)
    k_x, k_p = jax.random.split(root)
    perceptual_emb = jax.random.normal(k_x, (B, T, D), jnp.float32)
    params = init_params(k_p, D, H, L)

    # One-time weight packing (out of the per-call path).
    packed = pack_params(params)

    fwd = jax.jit(functools.partial(plan_recognition_forward, latent_dim=L))
    mean, std = jax.block_until_ready(fwd(perceptual_emb, packed))

    ref_mean, ref_std = reference_forward(perceptual_emb, params)
    np.testing.assert_allclose(np.asarray(mean), np.asarray(ref_mean),
                               rtol=1e-5, atol=1e-5)
    np.testing.assert_allclose(np.asarray(std), np.asarray(ref_std),
                               rtol=1e-5, atol=1e-5)

    # TODO(synk): the module's __call__ wraps (mean, std) in a TanhNormal
    # distribution object; distribution construction has no kernel equivalent,
    # the kernel returns (mean, std) exactly as forward() does.
    print("KERNEL_OK")
</pallas_src>

<mosaic_0001>
module attributes {stable_mosaic.version = 11 : i64} {
  func.func @plan_recognition_kernel(%arg0: memref<64x32xf32, #tpu.memory_space<vmem>>, %arg1: memref<32x128xf32, #tpu.memory_space<vmem>>, %arg2: memref<1x128xf32, #tpu.memory_space<vmem>>, %arg3: memref<128x128xf32, #tpu.memory_space<vmem>>, %arg4: memref<128x128xf32, #tpu.memory_space<vmem>>, %arg5: memref<1x128xf32, #tpu.memory_space<vmem>>, %arg6: memref<128x128xf32, #tpu.memory_space<vmem>>, %arg7: memref<128x128xf32, #tpu.memory_space<vmem>>, %arg8: memref<1x128xf32, #tpu.memory_space<vmem>>, %arg9: memref<8x128xf32, #tpu.memory_space<vmem>>, %arg10: memref<64x128xf32, #tpu.memory_space<vmem>>, %arg11: memref<64x128xf32, #tpu.memory_space<vmem>>) attributes {dimension_semantics = [], scalar_prefetch = 0 : i64, scratch_operands = 2 : i64, tpu.core_type = #tpu.core_type<tc>} {
    %0 = tpu.iota {dimensions = array<i32: 1>} : vector<8x128xi32>
    %c64_i32 = arith.constant 64 : i32
    %1 = vector.broadcast %c64_i32 : i32 to vector<8x128xi32>
    %2 = arith.cmpi slt, %0, %1 : vector<8x128xi32>
    %c0 = arith.constant 0 : index
    %c0_0 = arith.constant 0 : index
    %3 = vector.load %arg0[%c0, %c0_0] : memref<64x32xf32, #tpu.memory_space<vmem>>, vector<64x32xf32>
    %c0_1 = arith.constant 0 : index
    %c0_2 = arith.constant 0 : index
    %4 = vector.load %arg1[%c0_1, %c0_2] : memref<32x128xf32, #tpu.memory_space<vmem>>, vector<32x128xf32>
    %cst = arith.constant dense<0.000000e+00> : vector<64x128xf32>
    %5 = tpu.matmul %3, %4, %cst {dimension_numbers = #tpu.dot_dimension_numbers<[1], [0], [0], [1], [0, 0, 1, 1], [], []>} : vector<64x32xf32>, vector<32x128xf32>, vector<64x128xf32> -> vector<64x128xf32>
    %c0_3 = arith.constant 0 : index
    %c0_4 = arith.constant 0 : index
    %6 = vector.load %arg2[%c0_3, %c0_4] : memref<1x128xf32, #tpu.memory_space<vmem>>, vector<1x128xf32>
    %7 = vector.broadcast %6 : vector<1x128xf32> to vector<64x128xf32>
    %8 = arith.addf %5, %7 : vector<64x128xf32>
    %c0_5 = arith.constant 0 : index
    %c0_6 = arith.constant 0 : index
    %9 = vector.load %arg10[%c0_5, %c0_6] : memref<64x128xf32, #tpu.memory_space<vmem>>, vector<64x128xf32>
    tpu.vector_store %arg10[%c0_5, %c0_6], %8 {strides = array<i32>} : memref<64x128xf32, #tpu.memory_space<vmem>>, vector<64x128xf32>,
    %c0_7 = arith.constant 0 : index
    %c0_8 = arith.constant 0 : index
    %10 = vector.load %arg3[%c0_7, %c0_8] : memref<128x128xf32, #tpu.memory_space<vmem>>, vector<128x128xf32>
    %cst_9 = arith.constant 0.000000e+00 : f32
    %11 = vector.broadcast %cst_9 : f32 to vector<8x128xf32>
    %c0_10 = arith.constant 0 : index
    %c0_11 = arith.constant 0 : index
    %12 = vector.load %arg10[%c0_10, %c0_11] : memref<64x128xf32, #tpu.memory_space<vmem>>, vector<8x128xf32>
    %c56 = arith.constant 56 : index
    %c0_12 = arith.constant 0 : index
    %13 = vector.load %arg10[%c56, %c0_12] : memref<64x128xf32, #tpu.memory_space<vmem>>, vector<8x128xf32>
    %14 = arith.select %2, %12, %13 : vector<8x128xi1>, vector<8x128xf32>
    %cst_13 = arith.constant dense<0.000000e+00> : vector<8x128xf32>
    %15 = tpu.matmul %11, %10, %cst_13 {dimension_numbers = #tpu.dot_dimension_numbers<[1], [0], [0], [1], [0, 0, 1, 1], [], []>} : vector<8x128xf32>, vector<128x128xf32>, vector<8x128xf32> -> vector<8x128xf32>
    %16 = arith.addf %14, %15 : vector<8x128xf32>
    %cst_14 = arith.constant 0.000000e+00 : f32
    %17 = vector.broadcast %cst_14 : f32 to vector<8x128xf32>
    %18 = arith.maximumf %16, %17 : vector<8x128xf32>
    %c0_15 = arith.constant 0 : index
    %c0_16 = arith.constant 0 : index
    %19 = vector.load %arg11[%c0_15, %c0_16] : memref<64x128xf32, #tpu.memory_space<vmem>>, vector<8x128xf32>
    tpu.vector_store %arg11[%c0_15, %c0_16], %18 {strides = array<i32>} : memref<64x128xf32, #tpu.memory_space<vmem>>, vector<8x128xf32>,
    %c8 = arith.constant 8 : index
    %c0_17 = arith.constant 0 : index
    %20 = vector.load %arg10[%c8, %c0_17] : memref<64x128xf32, #tpu.memory_space<vmem>>, vector<8x128xf32>
    %c48 = arith.constant 48 : index
    %c0_18 = arith.constant 0 : index
    %21 = vector.load %arg10[%c48, %c0_18] : memref<64x128xf32, #tpu.memory_space<vmem>>, vector<8x128xf32>
    %22 = arith.select %2, %20, %21 : vector<8x128xi1>, vector<8x128xf32>
    %cst_19 = arith.constant dense<0.000000e+00> : vector<8x128xf32>
    %23 = tpu.matmul %18, %10, %cst_19 {dimension_numbers = #tpu.dot_dimension_numbers<[1], [0], [0], [1], [0, 0, 1, 1], [], []>} : vector<8x128xf32>, vector<128x128xf32>, vector<8x128xf32> -> vector<8x128xf32>
    %24 = arith.addf %22, %23 : vector<8x128xf32>
    %cst_20 = arith.constant 0.000000e+00 : f32
    %25 = vector.broadcast %cst_20 : f32 to vector<8x128xf32>
    %26 = arith.maximumf %24, %25 : vector<8x128xf32>
    %c8_21 = arith.constant 8 : index
    %c0_22 = arith.constant 0 : index
    %27 = vector.load %arg11[%c8_21, %c0_22] : memref<64x128xf32, #tpu.memory_space<vmem>>, vector<8x128xf32>
    tpu.vector_store %arg11[%c8_21, %c0_22], %26 {strides = array<i32>} : memref<64x128xf32, #tpu.memory_space<vmem>>, vector<8x128xf32>,
    %c16 = arith.constant 16 : index
    %c0_23 = arith.constant 0 : index
    %28 = vector.load %arg10[%c16, %c0_23] : memref<64x128xf32, #tpu.memory_space<vmem>>, vector<8x128xf32>
    %c40 = arith.constant 40 : index
    %c0_24 = arith.constant 0 : index
    %29 = vector.load %arg10[%c40, %c0_24] : memref<64x128xf32, #tpu.memory_space<vmem>>, vector<8x128xf32>
    %30 = arith.select %2, %28, %29 : vector<8x128xi1>, vector<8x128xf32>
    %cst_25 = arith.constant dense<0.000000e+00> : vector<8x128xf32>
    %31 = tpu.matmul %26, %10, %cst_25 {dimension_numbers = #tpu.dot_dimension_numbers<[1], [0], [0], [1], [0, 0, 1, 1], [], []>} : vector<8x128xf32>, vector<128x128xf32>, vector<8x128xf32> -> vector<8x128xf32>
    %32 = arith.addf %30, %31 : vector<8x128xf32>
    %cst_26 = arith.constant 0.000000e+00 : f32
    %33 = vector.broadcast %cst_26 : f32 to vector<8x128xf32>
    %34 = arith.maximumf %32, %33 : vector<8x128xf32>
    %c16_27 = arith.constant 16 : index
    %c0_28 = arith.constant 0 : index
    %35 = vector.load %arg11[%c16_27, %c0_28] : memref<64x128xf32, #tpu.memory_space<vmem>>, vector<8x128xf32>
    tpu.vector_store %arg11[%c16_27, %c0_28], %34 {strides = array<i32>} : memref<64x128xf32, #tpu.memory_space<vmem>>, vector<8x128xf32>,
    %c24 = arith.constant 24 : index
    %c0_29 = arith.constant 0 : index
    %36 = vector.load %arg10[%c24, %c0_29] : memref<64x128xf32, #tpu.memory_space<vmem>>, vector<8x128xf32>
    %c32 = arith.constant 32 : index
    %c0_30 = arith.constant 0 : index
    %37 = vector.load %arg10[%c32, %c0_30] : memref<64x128xf32, #tpu.memory_space<vmem>>, vector<8x128xf32>
    %38 = arith.select %2, %36, %37 : vector<8x128xi1>, vector<8x128xf32>
    %cst_31 = arith.constant dense<0.000000e+00> : vector<8x128xf32>
    %39 = tpu.matmul %34, %10, %cst_31 {dimension_numbers = #tpu.dot_dimension_numbers<[1], [0], [0], [1], [0, 0, 1, 1], [], []>} : vector<8x128xf32>, vector<128x128xf32>, vector<8x128xf32> -> vector<8x128xf32>
    %40 = arith.addf %38, %39 : vector<8x128xf32>
    %cst_32 = arith.constant 0.000000e+00 : f32
    %41 = vector.broadcast %cst_32 : f32 to vector<8x128xf32>
    %42 = arith.maximumf %40, %41 : vector<8x128xf32>
    %c24_33 = arith.constant 24 : index
    %c0_34 = arith.constant 0 : index
    %43 = vector.load %arg11[%c24_33, %c0_34] : memref<64x128xf32, #tpu.memory_space<vmem>>, vector<8x128xf32>
    tpu.vector_store %arg11[%c24_33, %c0_34], %42 {strides = array<i32>} : memref<64x128xf32, #tpu.memory_space<vmem>>, vector<8x128xf32>,
    %c32_35 = arith.constant 32 : index
    %c0_36 = arith.constant 0 : index
    %44 = vector.load %arg10[%c32_35, %c0_36] : memref<64x128xf32, #tpu.memory_space<vmem>>, vector<8x128xf32>
    %c24_37 = arith.constant 24 : index
    %c0_38 = arith.constant 0 : index
    %45 = vector.load %arg10[%c24_37, %c0_38] : memref<64x128xf32, #tpu.memory_space<vmem>>, vector<8x128xf32>
    %46 = arith.select %2, %44, %45 : vector<8x128xi1>, vector<8x128xf32>
    %cst_39 = arith.constant dense<0.000000e+00> : vector<8x128xf32>
    %47 = tpu.matmul %42, %10, %cst_39 {dimension_numbers = #tpu.dot_dimension_numbers<[1], [0], [0], [1], [0, 0, 1, 1], [], []>} : vector<8x128xf32>, vector<128x128xf32>, vector<8x128xf32> -> vector<8x128xf32>
    %48 = arith.addf %46, %47 : vector<8x128xf32>
    %cst_40 = arith.constant 0.000000e+00 : f32
    %49 = vector.broadcast %cst_40 : f32 to vector<8x128xf32>
    %50 = arith.maximumf %48, %49 : vector<8x128xf32>
    %c32_41 = arith.constant 32 : index
    %c0_42 = arith.constant 0 : index
    %51 = vector.load %arg11[%c32_41, %c0_42] : memref<64x128xf32, #tpu.memory_space<vmem>>, vector<8x128xf32>
    tpu.vector_store %arg11[%c32_41, %c0_42], %50 {strides = array<i32>} : memref<64x128xf32, #tpu.memory_space<vmem>>, vector<8x128xf32>,
    %c40_43 = arith.constant 40 : index
    %c0_44 = arith.constant 0 : index
    %52 = vector.load %arg10[%c40_43, %c0_44] : memref<64x128xf32, #tpu.memory_space<vmem>>, vector<8x128xf32>
    %c16_45 = arith.constant 16 : index
    %c0_46 = arith.constant 0 : index
    %53 = vector.load %arg10[%c16_45, %c0_46] : memref<64x128xf32, #tpu.memory_space<vmem>>, vector<8x128xf32>
    %54 = arith.select %2, %52, %53 : vector<8x128xi1>, vector<8x128xf32>
    %cst_47 = arith.constant dense<0.000000e+00> : vector<8x128xf32>
    %55 = tpu.matmul %50, %10, %cst_47 {dimension_numbers = #tpu.dot_dimension_numbers<[1], [0], [0], [1], [0, 0, 1, 1], [], []>} : vector<8x128xf32>, vector<128x128xf32>, vector<8x128xf32> -> vector<8x128xf32>
    %56 = arith.addf %54, %55 : vector<8x128xf32>
    %cst_48 = arith.constant 0.000000e+00 : f32
    %57 = vector.broadcast %cst_48 : f32 to vector<8x128xf32>
    %58 = arith.maximumf %56, %57 : vector<8x128xf32>
    %c40_49 = arith.constant 40 : index
    %c0_50 = arith.constant 0 : index
    %59 = vector.load %arg11[%c40_49, %c0_50] : memref<64x128xf32, #tpu.memory_space<vmem>>, vector<8x128xf32>
    tpu.vector_store %arg11[%c40_49, %c0_50], %58 {strides = array<i32>} : memref<64x128xf32, #tpu.memory_space<vmem>>, vector<8x128xf32>,
    %c48_51 = arith.constant 48 : index
    %c0_52 = arith.constant 0 : index
    %60 = vector.load %arg10[%c48_51, %c0_52] : memref<64x128xf32, #tpu.memory_space<vmem>>, vector<8x128xf32>
    %c8_53 = arith.constant 8 : index
    %c0_54 = arith.constant 0 : index
    %61 = vector.load %arg10[%c8_53, %c0_54] : memref<64x128xf32, #tpu.memory_space<vmem>>, vector<8x128xf32>
    %62 = arith.select %2, %60, %61 : vector<8x128xi1>, vector<8x128xf32>
    %cst_55 = arith.constant dense<0.000000e+00> : vector<8x128xf32>
    %63 = tpu.matmul %58, %10, %cst_55 {dimension_numbers = #tpu.dot_dimension_numbers<[1], [0], [0], [1], [0, 0, 1, 1], [], []>} : vector<8x128xf32>, vector<128x128xf32>, vector<8x128xf32> -> vector<8x128xf32>
    %64 = arith.addf %62, %63 : vector<8x128xf32>
    %cst_56 = arith.constant 0.000000e+00 : f32
    %65 = vector.broadcast %cst_56 : f32 to vector<8x128xf32>
    %66 = arith.maximumf %64, %65 : vector<8x128xf32>
    %c48_57 = arith.constant 48 : index
    %c0_58 = arith.constant 0 : index
    %67 = vector.load %arg11[%c48_57, %c0_58] : memref<64x128xf32, #tpu.memory_space<vmem>>, vector<8x128xf32>
    tpu.vector_store %arg11[%c48_57, %c0_58], %66 {strides = array<i32>} : memref<64x128xf32, #tpu.memory_space<vmem>>, vector<8x128xf32>,
    %c56_59 = arith.constant 56 : index
    %c0_60 = arith.constant 0 : index
    %68 = vector.load %arg10[%c56_59, %c0_60] : memref<64x128xf32, #tpu.memory_space<vmem>>, vector<8x128xf32>
    %c0_61 = arith.constant 0 : index
    %c0_62 = arith.constant 0 : index
    %69 = vector.load %arg10[%c0_61, %c0_62] : memref<64x128xf32, #tpu.memory_space<vmem>>, vector<8x128xf32>
    %70 = arith.select %2, %68, %69 : vector<8x128xi1>, vector<8x128xf32>
    %cst_63 = arith.constant dense<0.000000e+00> : vector<8x128xf32>
    %71 = tpu.matmul %66, %10, %cst_63 {dimension_numbers = #tpu.dot_dimension_numbers<[1], [0], [0], [1], [0, 0, 1, 1], [], []>} : vector<8x128xf32>, vector<128x128xf32>, vector<8x128xf32> -> vector<8x128xf32>
    %72 = arith.addf %70, %71 : vector<8x128xf32>
    %cst_64 = arith.constant 0.000000e+00 : f32
    %73 = vector.broadcast %cst_64 : f32 to vector<8x128xf32>
    %74 = arith.maximumf %72, %73 : vector<8x128xf32>
    %c56_65 = arith.constant 56 : index
    %c0_66 = arith.constant 0 : index
    %75 = vector.load %arg11[%c56_65, %c0_66] : memref<64x128xf32, #tpu.memory_space<vmem>>, vector<8x128xf32>
    tpu.vector_store %arg11[%c56_65, %c0_66], %74 {strides = array<i32>} : memref<64x128xf32, #tpu.memory_space<vmem>>, vector<8x128xf32>,
    %c0_67 = arith.constant 0 : index
    %c0_68 = arith.constant 0 : index
    %76 = vector.load %arg11[%c0_67, %c0_68] : memref<64x128xf32, #tpu.memory_space<vmem>>, vector<8x128xf32>
    %c56_69 = arith.constant 56 : index
    %c0_70 = arith.constant 0 : index
    %77 = vector.load %arg11[%c56_69, %c0_70] : memref<64x128xf32, #tpu.memory_space<vmem>>, vector<8x128xf32>
    %78 = arith.select %2, %76, %77 : vector<8x128xi1>, vector<8x128xf32>
    %c0_71 = arith.constant 0 : index
    %c0_72 = arith.constant 0 : index
    %79 = vector.load %arg10[%c0_71, %c0_72] : memref<64x128xf32, #tpu.memory_space<vmem>>, vector<8x128xf32>
    tpu.vector_store %arg10[%c0_71, %c0_72], %78 {strides = array<i32>} : memref<64x128xf32, #tpu.memory_space<vmem>>, vector<8x128xf32>,
    %c8_73 = arith.constant 8 : index
    %c0_74 = arith.constant 0 : index
    %80 = vector.load %arg11[%c8_73, %c0_74] : memref<64x128xf32, #tpu.memory_space<vmem>>, vector<8x128xf32>
    %c48_75 = arith.constant 48 : index
    %c0_76 = arith.constant 0 : index
    %81 = vector.load %arg11[%c48_75, %c0_76] : memref<64x128xf32, #tpu.memory_space<vmem>>, vector<8x128xf32>
    %82 = arith.select %2, %80, %81 : vector<8x128xi1>, vector<8x128xf32>
    %c8_77 = arith.constant 8 : index
    %c0_78 = arith.constant 0 : index
    %83 = vector.load %arg10[%c8_77, %c0_78] : memref<64x128xf32, #tpu.memory_space<vmem>>, vector<8x128xf32>
    tpu.vector_store %arg10[%c8_77, %c0_78], %82 {strides = array<i32>} : memref<64x128xf32, #tpu.memory_space<vmem>>, vector<8x128xf32>,
    %c16_79 = arith.constant 16 : index
    %c0_80 = arith.constant 0 : index
    %84 = vector.load %arg11[%c16_79, %c0_80] : memref<64x128xf32, #tpu.memory_space<vmem>>, vector<8x128xf32>
    %c40_81 = arith.constant 40 : index
    %c0_82 = arith.constant 0 : index
    %85 = vector.load %arg11[%c40_81, %c0_82] : memref<64x128xf32, #tpu.memory_space<vmem>>, vector<8x128xf32>
    %86 = arith.select %2, %84, %85 : vector<8x128xi1>, vector<8x128xf32>
    %c16_83 = arith.constant 16 : index
    %c0_84 = arith.constant 0 : index
    %87 = vector.load %arg10[%c16_83, %c0_84] : memref<64x128xf32, #tpu.memory_space<vmem>>, vector<8x128xf32>
    tpu.vector_store %arg10[%c16_83, %c0_84], %86 {strides = array<i32>} : memref<64x128xf32, #tpu.memory_space<vmem>>, vector<8x128xf32>,
    %c24_85 = arith.constant 24 : index
    %c0_86 = arith.constant 0 : index
    %88 = vector.load %arg11[%c24_85, %c0_86] : memref<64x128xf32, #tpu.memory_space<vmem>>, vector<8x128xf32>
    %c32_87 = arith.constant 32 : index
    %c0_88 = arith.constant 0 : index
    %89 = vector.load %arg11[%c32_87, %c0_88] : memref<64x128xf32, #tpu.memory_space<vmem>>, vector<8x128xf32>
    %90 = arith.select %2, %88, %89 : vector<8x128xi1>, vector<8x128xf32>
    %c24_89 = arith.constant 24 : index
    %c0_90 = arith.constant 0 : index
    %91 = vector.load %arg10[%c24_89, %c0_90] : memref<64x128xf32, #tpu.memory_space<vmem>>, vector<8x128xf32>
    tpu.vector_store %arg10[%c24_89, %c0_90], %90 {strides = array<i32>} : memref<64x128xf32, #tpu.memory_space<vmem>>, vector<8x128xf32>,
    %c32_91 = arith.constant 32 : index
    %c0_92 = arith.constant 0 : index
    %92 = vector.load %arg11[%c32_91, %c0_92] : memref<64x128xf32, #tpu.memory_space<vmem>>, vector<8x128xf32>
    %c24_93 = arith.constant 24 : index
    %c0_94 = arith.constant 0 : index
    %93 = vector.load %arg11[%c24_93, %c0_94] : memref<64x128xf32, #tpu.memory_space<vmem>>, vector<8x128xf32>
    %94 = arith.select %2, %92, %93 : vector<8x128xi1>, vector<8x128xf32>
    %c32_95 = arith.constant 32 : index
    %c0_96 = arith.constant 0 : index
    %95 = vector.load %arg10[%c32_95, %c0_96] : memref<64x128xf32, #tpu.memory_space<vmem>>, vector<8x128xf32>
    tpu.vector_store %arg10[%c32_95, %c0_96], %94 {strides = array<i32>} : memref<64x128xf32, #tpu.memory_space<vmem>>, vector<8x128xf32>,
    %c40_97 = arith.constant 40 : index
    %c0_98 = arith.constant 0 : index
    %96 = vector.load %arg11[%c40_97, %c0_98] : memref<64x128xf32, #tpu.memory_space<vmem>>, vector<8x128xf32>
    %c16_99 = arith.constant 16 : index
    %c0_100 = arith.constant 0 : index
    %97 = vector.load %arg11[%c16_99, %c0_100] : memref<64x128xf32, #tpu.memory_space<vmem>>, vector<8x128xf32>
    %98 = arith.select %2, %96, %97 : vector<8x128xi1>, vector<8x128xf32>
    %c40_101 = arith.constant 40 : index
    %c0_102 = arith.constant 0 : index
    %99 = vector.load %arg10[%c40_101, %c0_102] : memref<64x128xf32, #tpu.memory_space<vmem>>, vector<8x128xf32>
    tpu.vector_store %arg10[%c40_101, %c0_102], %98 {strides = array<i32>} : memref<64x128xf32, #tpu.memory_space<vmem>>, vector<8x128xf32>,
    %c48_103 = arith.constant 48 : index
    %c0_104 = arith.constant 0 : index
    %100 = vector.load %arg11[%c48_103, %c0_104] : memref<64x128xf32, #tpu.memory_space<vmem>>, vector<8x128xf32>
    %c8_105 = arith.constant 8 : index
    %c0_106 = arith.constant 0 : index
    %101 = vector.load %arg11[%c8_105, %c0_106] : memref<64x128xf32, #tpu.memory_space<vmem>>, vector<8x128xf32>
    %102 = arith.select %2, %100, %101 : vector<8x128xi1>, vector<8x128xf32>
    %c48_107 = arith.constant 48 : index
    %c0_108 = arith.constant 0 : index
    %103 = vector.load %arg10[%c48_107, %c0_108] : memref<64x128xf32, #tpu.memory_space<vmem>>, vector<8x128xf32>
    tpu.vector_store %arg10[%c48_107, %c0_108], %102 {strides = array<i32>} : memref<64x128xf32, #tpu.memory_space<vmem>>, vector<8x128xf32>,
    %c56_109 = arith.constant 56 : index
    %c0_110 = arith.constant 0 : index
    %104 = vector.load %arg11[%c56_109, %c0_110] : memref<64x128xf32, #tpu.memory_space<vmem>>, vector<8x128xf32>
    %c0_111 = arith.constant 0 : index
    %c0_112 = arith.constant 0 : index
    %105 = vector.load %arg11[%c0_111, %c0_112] : memref<64x128xf32, #tpu.memory_space<vmem>>, vector<8x128xf32>
    %106 = arith.select %2, %104, %105 : vector<8x128xi1>, vector<8x128xf32>
    %c56_113 = arith.constant 56 : index
    %c0_114 = arith.constant 0 : index
    %107 = vector.load %arg10[%c56_113, %c0_114] : memref<64x128xf32, #tpu.memory_space<vmem>>, vector<8x128xf32>
    tpu.vector_store %arg10[%c56_113, %c0_114], %106 {strides = array<i32>} : memref<64x128xf32, #tpu.memory_space<vmem>>, vector<8x128xf32>,
    %c0_115 = arith.constant 0 : index
    %c0_116 = arith.constant 0 : index
    %108 = vector.load %arg10[%c0_115, %c0_116] : memref<64x128xf32, #tpu.memory_space<vmem>>, vector<64x128xf32>
    %c0_117 = arith.constant 0 : index
    %c0_118 = arith.constant 0 : index
    %109 = vector.load %arg4[%c0_117, %c0_118] : memref<128x128xf32, #tpu.memory_space<vmem>>, vector<128x128xf32>
    %cst_119 = arith.constant dense<0.000000e+00> : vector<64x128xf32>
    %110 = tpu.matmul %108, %109, %cst_119 {dimension_numbers = #tpu.dot_dimension_numbers<[1], [0], [0], [1], [0, 0, 1, 1], [], []>} : vector<64x128xf32>, vector<128x128xf32>, vector<64x128xf32> -> vector<64x128xf32>
    %c0_120 = arith.constant 0 : index
    %c0_121 = arith.constant 0 : index
    %111 = vector.load %arg5[%c0_120, %c0_121] : memref<1x128xf32, #tpu.memory_space<vmem>>, vector<1x128xf32>
    %112 = vector.broadcast %111 : vector<1x128xf32> to vector<64x128xf32>
    %113 = arith.addf %110, %112 : vector<64x128xf32>
    %c0_122 = arith.constant 0 : index
    %c0_123 = arith.constant 0 : index
    %114 = vector.load %arg11[%c0_122, %c0_123] : memref<64x128xf32, #tpu.memory_space<vmem>>, vector<64x128xf32>
    tpu.vector_store %arg11[%c0_122, %c0_123], %113 {strides = array<i32>} : memref<64x128xf32, #tpu.memory_space<vmem>>, vector<64x128xf32>,
    %c0_124 = arith.constant 0 : index
    %c0_125 = arith.constant 0 : index
    %115 = vector.load %arg6[%c0_124, %c0_125] : memref<128x128xf32, #tpu.memory_space<vmem>>, vector<128x128xf32>
    %cst_126 = arith.constant 0.000000e+00 : f32
    %116 = vector.broadcast %cst_126 : f32 to vector<8x128xf32>
    %c0_127 = arith.constant 0 : index
    %c0_128 = arith.constant 0 : index
    %117 = vector.load %arg11[%c0_127, %c0_128] : memref<64x128xf32, #tpu.memory_space<vmem>>, vector<8x128xf32>
    %cst_129 = arith.constant dense<0.000000e+00> : vector<8x128xf32>
    %118 = tpu.matmul %116, %115, %cst_129 {dimension_numbers = #tpu.dot_dimension_numbers<[1], [0], [0], [1], [0, 0, 1, 1], [], []>} : vector<8x128xf32>, vector<128x128xf32>, vector<8x128xf32> -> vector<8x128xf32>
    %119 = arith.addf %117, %118 : vector<8x128xf32>
    %cst_130 = arith.constant 0.000000e+00 : f32
    %120 = vector.broadcast %cst_130 : f32 to vector<8x128xf32>
    %121 = arith.maximumf %119, %120 : vector<8x128xf32>
    %c8_131 = arith.constant 8 : index
    %c0_132 = arith.constant 0 : index
    %122 = vector.load %arg11[%c8_131, %c0_132] : memref<64x128xf32, #tpu.memory_space<vmem>>, vector<8x128xf32>
    %cst_133 = arith.constant dense<0.000000e+00> : vector<8x128xf32>
    %123 = tpu.matmul %121, %115, %cst_133 {dimension_numbers = #tpu.dot_dimension_numbers<[1], [0], [0], [1], [0, 0, 1, 1], [], []>} : vector<8x128xf32>, vector<128x128xf32>, vector<8x128xf32> -> vector<8x128xf32>
    %124 = arith.addf %122, %123 : vector<8x128xf32>
    %cst_134 = arith.constant 0.000000e+00 : f32
    %125 = vector.broadcast %cst_134 : f32 to vector<8x128xf32>
    %126 = arith.maximumf %124, %125 : vector<8x128xf32>
    %c16_135 = arith.constant 16 : index
    %c0_136 = arith.constant 0 : index
    %127 = vector.load %arg11[%c16_135, %c0_136] : memref<64x128xf32, #tpu.memory_space<vmem>>, vector<8x128xf32>
    %cst_137 = arith.constant dense<0.000000e+00> : vector<8x128xf32>
    %128 = tpu.matmul %126, %115, %cst_137 {dimension_numbers = #tpu.dot_dimension_numbers<[1], [0], [0], [1], [0, 0, 1, 1], [], []>} : vector<8x128xf32>, vector<128x128xf32>, vector<8x128xf32> -> vector<8x128xf32>
    %129 = arith.addf %127, %128 : vector<8x128xf32>
    %cst_138 = arith.constant 0.000000e+00 : f32
    %130 = vector.broadcast %cst_138 : f32 to vector<8x128xf32>
    %131 = arith.maximumf %129, %130 : vector<8x128xf32>
    %c24_139 = arith.constant 24 : index
    %c0_140 = arith.constant 0 : index
    %132 = vector.load %arg11[%c24_139, %c0_140] : memref<64x128xf32, #tpu.memory_space<vmem>>, vector<8x128xf32>
    %cst_141 = arith.constant dense<0.000000e+00> : vector<8x128xf32>
    %133 = tpu.matmul %131, %115, %cst_141 {dimension_numbers = #tpu.dot_dimension_numbers<[1], [0], [0], [1], [0, 0, 1, 1], [], []>} : vector<8x128xf32>, vector<128x128xf32>, vector<8x128xf32> -> vector<8x128xf32>
    %134 = arith.addf %132, %133 : vector<8x128xf32>
    %cst_142 = arith.constant 0.000000e+00 : f32
    %135 = vector.broadcast %cst_142 : f32 to vector<8x128xf32>
    %136 = arith.maximumf %134, %135 : vector<8x128xf32>
    %c32_143 = arith.constant 32 : index
    %c0_144 = arith.constant 0 : index
    %137 = vector.load %arg11[%c32_143, %c0_144] : memref<64x128xf32, #tpu.memory_space<vmem>>, vector<8x128xf32>
    %cst_145 = arith.constant dense<0.000000e+00> : vector<8x128xf32>
    %138 = tpu.matmul %136, %115, %cst_145 {dimension_numbers = #tpu.dot_dimension_numbers<[1], [0], [0], [1], [0, 0, 1, 1], [], []>} : vector<8x128xf32>, vector<128x128xf32>, vector<8x128xf32> -> vector<8x128xf32>
    %139 = arith.addf %137, %138 : vector<8x128xf32>
    %cst_146 = arith.constant 0.000000e+00 : f32
    %140 = vector.broadcast %cst_146 : f32 to vector<8x128xf32>
    %141 = arith.maximumf %139, %140 : vector<8x128xf32>
    %c40_147 = arith.constant 40 : index
    %c0_148 = arith.constant 0 : index
    %142 = vector.load %arg11[%c40_147, %c0_148] : memref<64x128xf32, #tpu.memory_space<vmem>>, vector<8x128xf32>
    %cst_149 = arith.constant dense<0.000000e+00> : vector<8x128xf32>
    %143 = tpu.matmul %141, %115, %cst_149 {dimension_numbers = #tpu.dot_dimension_numbers<[1], [0], [0], [1], [0, 0, 1, 1], [], []>} : vector<8x128xf32>, vector<128x128xf32>, vector<8x128xf32> -> vector<8x128xf32>
    %144 = arith.addf %142, %143 : vector<8x128xf32>
    %cst_150 = arith.constant 0.000000e+00 : f32
    %145 = vector.broadcast %cst_150 : f32 to vector<8x128xf32>
    %146 = arith.maximumf %144, %145 : vector<8x128xf32>
    %c48_151 = arith.constant 48 : index
    %c0_152 = arith.constant 0 : index
    %147 = vector.load %arg11[%c48_151, %c0_152] : memref<64x128xf32, #tpu.memory_space<vmem>>, vector<8x128xf32>
    %cst_153 = arith.constant dense<0.000000e+00> : vector<8x128xf32>
    %148 = tpu.matmul %146, %115, %cst_153 {dimension_numbers = #tpu.dot_dimension_numbers<[1], [0], [0], [1], [0, 0, 1, 1], [], []>} : vector<8x128xf32>, vector<128x128xf32>, vector<8x128xf32> -> vector<8x128xf32>
    %149 = arith.addf %147, %148 : vector<8x128xf32>
    %cst_154 = arith.constant 0.000000e+00 : f32
    %150 = vector.broadcast %cst_154 : f32 to vector<8x128xf32>
    %151 = arith.maximumf %149, %150 : vector<8x128xf32>
    %c56_155 = arith.constant 56 : index
    %c0_156 = arith.constant 0 : index
    %152 = vector.load %arg11[%c56_155, %c0_156] : memref<64x128xf32, #tpu.memory_space<vmem>>, vector<8x128xf32>
    %cst_157 = arith.constant dense<0.000000e+00> : vector<8x128xf32>
    %153 = tpu.matmul %151, %115, %cst_157 {dimension_numbers = #tpu.dot_dimension_numbers<[1], [0], [0], [1], [0, 0, 1, 1], [], []>} : vector<8x128xf32>, vector<128x128xf32>, vector<8x128xf32> -> vector<8x128xf32>
    %154 = arith.addf %152, %153 : vector<8x128xf32>
    %cst_158 = arith.constant 0.000000e+00 : f32
    %155 = vector.broadcast %cst_158 : f32 to vector<8x128xf32>
    %156 = arith.maximumf %154, %155 : vector<8x128xf32>
    %c0_159 = arith.constant 0 : index
    %c0_160 = arith.constant 0 : index
    %157 = vector.load %arg7[%c0_159, %c0_160] : memref<128x128xf32, #tpu.memory_space<vmem>>, vector<128x128xf32>
    %cst_161 = arith.constant dense<0.000000e+00> : vector<8x128xf32>
    %158 = tpu.matmul %156, %157, %cst_161 {dimension_numbers = #tpu.dot_dimension_numbers<[1], [0], [0], [1], [0, 0, 1, 1], [], []>} : vector<8x128xf32>, vector<128x128xf32>, vector<8x128xf32> -> vector<8x128xf32>
    %c0_162 = arith.constant 0 : index
    %c0_163 = arith.constant 0 : index
    %159 = vector.load %arg8[%c0_162, %c0_163] : memref<1x128xf32, #tpu.memory_space<vmem>>, vector<1x128xf32>
    %160 = vector.broadcast %159 : vector<1x128xf32> to vector<8x128xf32>
    %161 = arith.addf %158, %160 : vector<8x128xf32>
    %162 = tpu.iota {dimensions = array<i32: 1>} : vector<8x128xi32>
    %cst_164 = arith.constant 0.000000e+00 : f32
    %163 = vector.broadcast %cst_164 : f32 to vector<8x128xf32>
    %164 = arith.maximumf %161, %163 : vector<8x128xf32>
    %165 = math.absf %161 : vector<8x128xf32>
    %cst_165 = arith.constant 0.000000e+00 : f32
    %166 = vector.broadcast %cst_165 : f32 to vector<8x128xf32>
    %167 = arith.subf %166, %165 : vector<8x128xf32>
    %168 = math.exp %167 : vector<8x128xf32>
    %cst_166 = arith.constant 1.000000e+00 : f32
    %169 = vector.broadcast %cst_166 : f32 to vector<8x128xf32>
    %170 = arith.addf %169, %168 : vector<8x128xf32>
    %171 = math.log %170 : vector<8x128xf32>
    %172 = arith.addf %164, %171 : vector<8x128xf32>
    %cst_167 = arith.constant 9.99999974E-5 : f32
    %173 = vector.broadcast %cst_167 : f32 to vector<8x128xf32>
    %174 = arith.addf %172, %173 : vector<8x128xf32>
    %c16_i32 = arith.constant 16 : i32
    %175 = vector.broadcast %c16_i32 : i32 to vector<8x128xi32>
    %176 = arith.cmpi sge, %162, %175 : vector<8x128xi32>
    %177 = arith.select %176, %174, %161 : vector<8x128xi1>, vector<8x128xf32>
    %c0_168 = arith.constant 0 : index
    %c0_169 = arith.constant 0 : index
    %178 = vector.load %arg9[%c0_168, %c0_169] : memref<8x128xf32, #tpu.memory_space<vmem>>, vector<8x128xf32>
    tpu.vector_store %arg9[%c0_168, %c0_169], %177 {strides = array<i32>} : memref<8x128xf32, #tpu.memory_space<vmem>>, vector<8x128xf32>,
    return
  }
}

</mosaic_0001>

<llo_original>
// kernel: plan_recognition_forward.1
$region0: #{plan_recognition_forward.1}
  #allocation0 [shape = 'u32[]', space=smem, size = 0x4, offset = 0x4, fixed_abs, tag = 'smem constant byte address 0x4 - core index']
  #allocation1 [shape = 'u32[144,128]{1,0:T(1,128)}', space=vmem, size = 0x12000, scoped, tag = 'internal scratch']
  #allocation2 [shape = 'f32[64,128]{1,0:T(8,128)}', space=vmem, size = 0x8000, scoped, tag = 'scratch operand']
  #allocation3 [shape = 'f32[64,128]{1,0:T(8,128)}', space=vmem, size = 0x8000, scoped, tag = 'scratch operand']
  %s0 = inlined_call_operand.vmem [shape: f32[64,32], index: 0, kind: input, shape index: {}]
  %s1 = inlined_call_operand.hbm [shape: f32[32,128], index: 1, kind: input, shape index: {}]
  %s2 = inlined_call_operand.hbm [shape: f32[1,128], index: 2, kind: input, shape index: {}]
  %s3 = inlined_call_operand.hbm [shape: f32[128,128], index: 3, kind: input, shape index: {}]
  %s4 = inlined_call_operand.vmem [shape: f32[128,128], index: 4, kind: input, shape index: {}]
  %s5 = inlined_call_operand.hbm [shape: f32[1,128], index: 5, kind: input, shape index: {}]
  %s6 = inlined_call_operand.hbm [shape: f32[128,128], index: 6, kind: input, shape index: {}]
  %s7 = inlined_call_operand.hbm [shape: f32[128,128], index: 7, kind: input, shape index: {}]
  %s8 = inlined_call_operand.hbm [shape: f32[1,128], index: 8, kind: input, shape index: {}]
  %s9 = inlined_call_operand.vmem [shape: f32[8,128], index: 9, kind: output, shape index: {}]
  %s10 = sld [smem:[#allocation0]]
  $region74: #{plan_recognition_forward.1} parent=0
    _
  %s12 = ssub.s32 1, %s10
  %s13 = scalar_select 0, %s12, %s10
  $region1: #{plan_recognition_forward.1} parent=0
    #allocation4 [shape = 'u8[16384]{0}', space=vmem, size = 0x4000, scoped, tag = 'input window, operand 1, single buffered']
    #allocation5 [shape = 's32[1]{0}', space=sflag, size = 0x4, scoped, tag = 'scoped memory for plan_recognition_forward.1']
    #allocation6 [shape = 'u8[512]{0}', space=vmem, size = 0x400, scoped, tag = 'input window, operand 2, single buffered']
    #allocation7 [shape = 's32[1]{0}', space=sflag, size = 0x4, scoped, tag = 'scoped memory for plan_recognition_forward.1']
    #allocation8 [shape = 'u8[65536]{0}', space=vmem, size = 0x10000, scoped, tag = 'input window, operand 3, single buffered']
    #allocation9 [shape = 'u8[512]{0}', space=vmem, size = 0x400, scoped, tag = 'input window, operand 5, single buffered']
    #allocation10 [shape = 's32[1]{0}', space=sflag, size = 0x4, scoped, tag = 'scoped memory for plan_recognition_forward.1']
    #allocation11 [shape = 'u8[65536]{0}', space=vmem, size = 0x10000, scoped, tag = 'input window, operand 6, single buffered']
    #allocation12 [shape = 'u8[65536]{0}', space=vmem, size = 0x10000, scoped, tag = 'input window, operand 7, single buffered']
    #allocation13 [shape = 's32[1]{0}', space=sflag, size = 0x4, scoped, tag = 'scoped memory for plan_recognition_forward.1']
    #allocation14 [shape = 'u8[512]{0}', space=vmem, size = 0x400, scoped, tag = 'input window, operand 8, single buffered']
    %14 = vsyncpa [#allocation5], 0
    %15 = vsyncpa [#allocation7], 0
    %16 = vsyncpa [#allocation10], 0
    %17 = vsyncpa [#allocation13], 0
    // Predicated region
    $region2: #{plan_recognition_forward.1} parent=1 // pred_check
      _
    $region3: #{plan_recognition_forward.1} parent=1 // pred_check_branch
      %19 = sbr.rel (0) target = $region5
    $region4: #{plan_recognition_forward.1} parent=1 // pred_region
      _
    $region5: #{plan_recognition_forward.1} parent=1 // pred_fallthru
      _
    // Predicated region
    $region6: #{plan_recognition_forward.1} parent=1 // pred_check
      _
    $region7: #{plan_recognition_forward.1} parent=1 // pred_check_branch
      %21 = sbr.rel (0) target = $region9
    $region8: #{plan_recognition_forward.1} parent=1 // pred_region
      %s23 = ssub.s32 512, 512
      %24 = vsyncadd [#allocation5], %s23
      %s25 = sshll.u32 [#allocation4], 4
      %s26 = int_to_ptr.vmem [resolvable:$true] %s25
      %31 = dma.hbm_to_vmem [thread:$0]  %s1, 512, %s26, [#allocation5], 128, 128, 8
    $region9: #{plan_recognition_forward.1} parent=1 // pred_fallthru
      _
    // Predicated region
    $region10: #{plan_recognition_forward.1} parent=1 // pred_check
      _
    $region11: #{plan_recognition_forward.1} parent=1 // pred_check_branch
      %33 = sbr.rel (0) target = $region13
    $region12: #{plan_recognition_forward.1} parent=1 // pred_region
      %s35 = ssub.s32 16, 16
      %36 = vsyncadd [#allocation7], %s35
      %s38 = sshll.u32 [#allocation6], 4
      %s39 = int_to_ptr.vmem [resolvable:$true] %s38
      %41 = dma.hbm_to_vmem [thread:$0]  %s2, 16, %s39, [#allocation7]
    $region13: #{plan_recognition_forward.1} parent=1 // pred_fallthru
      _
    // Predicated region
    $region14: #{plan_recognition_forward.1} parent=1 // pred_check
      _
    $region15: #{plan_recognition_forward.1} parent=1 // pred_check_branch
      %43 = sbr.rel (0) target = $region17
    $region16: #{plan_recognition_forward.1} parent=1 // pred_region
      %s45 = ssub.s32 2048, 2048
      %46 = vsyncadd [#allocation7], %s45
      %s47 = sshll.u32 [#allocation8], 4
      %s48 = int_to_ptr.vmem [resolvable:$true] %s47
      %53 = dma.hbm_to_vmem [thread:$0]  %s3, 2048, %s48, [#allocation7], 128, 128, 8
    $region17: #{plan_recognition_forward.1} parent=1 // pred_fallthru
      _
    // Predicated region
    $region18: #{plan_recognition_forward.1} parent=1 // pred_check
      _
    $region19: #{plan_recognition_forward.1} parent=1 // pred_check_branch
      %55 = sbr.rel (0) target = $region21
    $region20: #{plan_recognition_forward.1} parent=1 // pred_region
      _
    $region21: #{plan_recognition_forward.1} parent=1 // pred_fallthru
      _
    // Predicated region
    $region22: #{plan_recognition_forward.1} parent=1 // pred_check
      _
    $region23: #{plan_recognition_forward.1} parent=1 // pred_check_branch
      %57 = sbr.rel (0) target = $region25
    $region24: #{plan_recognition_forward.1} parent=1 // pred_region
      %s59 = ssub.s32 16, 16
      %60 = vsyncadd [#allocation10], %s59
      %s62 = sshll.u32 [#allocation9], 4
      %s63 = int_to_ptr.vmem [resolvable:$true] %s62
      %65 = dma.hbm_to_vmem [thread:$0]  %s5, 16, %s63, [#allocation10]
    $region25: #{plan_recognition_forward.1} parent=1 // pred_fallthru
      _
    // Predicated region
    $region26: #{plan_recognition_forward.1} parent=1 // pred_check
      _
    $region27: #{plan_recognition_forward.1} parent=1 // pred_check_branch
      %67 = sbr.rel (0) target = $region29
    $region28: #{plan_recognition_forward.1} parent=1 // pred_region
      %s69 = ssub.s32 2048, 2048
      %70 = vsyncadd [#allocation10], %s69
      %s71 = sshll.u32 [#allocation11], 4
      %s72 = int_to_ptr.vmem [resolvable:$true] %s71
      %77 = dma.hbm_to_vmem [thread:$0]  %s6, 2048, %s72, [#allocation10], 128, 128, 8
    $region29: #{plan_recognition_forward.1} parent=1 // pred_fallthru
      _
    // Predicated region
    $region30: #{plan_recognition_forward.1} parent=1 // pred_check
      _
    $region31: #{plan_recognition_forward.1} parent=1 // pred_check_branch
      %79 = sbr.rel (0) target = $region33
    $region32: #{plan_recognition_forward.1} parent=1 // pred_region
      %s81 = ssub.s32 2048, 2048
      %82 = vsyncadd [#allocation13], %s81
      %s83 = sshll.u32 [#allocation12], 4
      %s84 = int_to_ptr.vmem [resolvable:$true] %s83
      %89 = dma.hbm_to_vmem [thread:$0]  %s7, 2048, %s84, [#allocation13], 128, 128, 8
    $region33: #{plan_recognition_forward.1} parent=1 // pred_fallthru
      _
    // Predicated region
    $region34: #{plan_recognition_forward.1} parent=1 // pred_check
      _
    $region35: #{plan_recognition_forward.1} parent=1 // pred_check_branch
      %91 = sbr.rel (0) target = $region37
    $region36: #{plan_recognition_forward.1} parent=1 // pred_region
      %s93 = ssub.s32 16, 16
      %94 = vsyncadd [#allocation13], %s93
      %s96 = sshll.u32 [#allocation14], 4
      %s97 = int_to_ptr.vmem [resolvable:$true] %s96
      %99 = dma.hbm_to_vmem [thread:$0]  %s8, 16, %s97, [#allocation13]
    $region37: #{plan_recognition_forward.1} parent=1 // pred_fallthru
      _
    // Predicated region
    $region38: #{plan_recognition_forward.1} parent=1 // pred_check
      _
    $region39: #{plan_recognition_forward.1} parent=1 // pred_check_branch
      %101 = sbr.rel (0) target = $region41
    $region40: #{plan_recognition_forward.1} parent=1 // pred_region
      %102 = dma.done [#allocation5], 512
    $region41: #{plan_recognition_forward.1} parent=1 // pred_fallthru
      _
    // Predicated region
    $region42: #{plan_recognition_forward.1} parent=1 // pred_check
      _
    $region43: #{plan_recognition_forward.1} parent=1 // pred_check_branch
      %104 = sbr.rel (0) target = $region45
    $region44: #{plan_recognition_forward.1} parent=1 // pred_region
      %105 = dma.done [#allocation7], 16
    $region45: #{plan_recognition_forward.1} parent=1 // pred_fallthru
      _
    // Predicated region
    $region46: #{plan_recognition_forward.1} parent=1 // pred_check
      _
    $region47: #{plan_recognition_forward.1} parent=1 // pred_check_branch
      %107 = sbr.rel (0) target = $region49
    $region48: #{plan_recognition_forward.1} parent=1 // pred_region
      %108 = dma.done [#allocation7], 2048
    $region49: #{plan_recognition_forward.1} parent=1 // pred_fallthru
      _
    // Predicated region
    $region50: #{plan_recognition_forward.1} parent=1 // pred_check
      _
    $region51: #{plan_recognition_forward.1} parent=1 // pred_check_branch
      %110 = sbr.rel (0) target = $region53
    $region52: #{plan_recognition_forward.1} parent=1 // pred_region
      %111 = dma.done [#allocation10], 16
    $region53: #{plan_recognition_forward.1} parent=1 // pred_fallthru
      _
    // Predicated region
    $region54: #{plan_recognition_forward.1} parent=1 // pred_check
      _
    $region55: #{plan_recognition_forward.1} parent=1 // pred_check_branch
      %113 = sbr.rel (0) target = $region57
    $region56: #{plan_recognition_forward.1} parent=1 // pred_region
      %114 = dma.done [#allocation10], 2048
    $region57: #{plan_recognition_forward.1} parent=1 // pred_fallthru
      _
    // Predicated region
    $region58: #{plan_recognition_forward.1} parent=1 // pred_check
      _
    $region59: #{plan_recognition_forward.1} parent=1 // pred_check_branch
      %116 = sbr.rel (0) target = $region61
    $region60: #{plan_recognition_forward.1} parent=1 // pred_region
      %117 = dma.done [#allocation13], 2048
    $region61: #{plan_recognition_forward.1} parent=1 // pred_fallthru
      _
    // Predicated region
    $region62: #{plan_recognition_forward.1} parent=1 // pred_check
      _
    $region63: #{plan_recognition_forward.1} parent=1 // pred_check_branch
      %119 = sbr.rel (0) target = $region65
    $region64: #{plan_recognition_forward.1} parent=1 // pred_region
      %120 = dma.done [#allocation13], 16
    $region65: #{plan_recognition_forward.1} parent=1 // pred_fallthru
      _
    %v121 = vlaneseq
    %v122 = vand.u32 %v121, 127
    %vm123 = vcmp.lt.s32.totalorder %v122, 64
    %v124 = vld [vmem:[%s0] sm:$0xff]
    %v125 = vld [vmem:[%s0 + $0x8] sm:$0xff]
    %v126 = vld [vmem:[%s0 + $0x10] sm:$0xff]
    %v127 = vld [vmem:[%s0 + $0x18] sm:$0xff]
    %v128 = vld [vmem:[%s0 + $0x20] sm:$0xff]
    %v129 = vld [vmem:[%s0 + $0x28] sm:$0xff]
    %v130 = vld [vmem:[%s0 + $0x30] sm:$0xff]
    %v131 = vld [vmem:[%s0 + $0x38] sm:$0xff]
    %v132 = vld [vmem:[#allocation4] sm:$0xff]
    %v133 = vld [vmem:[#allocation4 + $0x8] sm:$0xff]
    %v134 = vld [vmem:[#allocation4 + $0x10] sm:$0xff]
    %v135 = vld [vmem:[#allocation4 + $0x18] sm:$0xff]
    %v136 = vld [vmem:[#allocation6] sm:$0x1]
    %v138 = vlaneseq
    %v139 = vshrl.u32 %v138, 7
    %v140 = vsub.s32 0, %v139
    %v141 = vrot.slane %v136, %v140
    %vm143 = vcmask 261120
    %v145 = vsel %vm143, %v124, 0
    %v148 = vsel %vm143, %v125, 0
    %v151 = vsel %vm143, %v126, 0
    %v154 = vsel %vm143, %v127, 0
    %v157 = vsel %vm143, %v128, 0
    %v160 = vsel %vm143, %v129, 0
    %v163 = vsel %vm143, %v130, 0
    %v166 = vsel %vm143, %v131, 0
    %168 = vmatprep.subr.mxu0 0.0
    %169 = vmatpush1.msra.mxu0 0.0
    %170 = vmatprep.subr.mxu0 0.0
    %171 = vmatpush1.msra.mxu0 0.0
    %172 = vmatprep.subr.mxu0 0.0
    %173 = vmatpush1.msra.mxu0 0.0
    %174 = vmatprep.subr.mxu0 0.0
    %175 = vmatpush1.msra.mxu0 0.0
    %176 = vmatprep.subr.mxu0 0.0
    %177 = vmatpush1.msra.mxu0 0.0
    %178 = vmatprep.subr.mxu0 0.0
    %179 = vmatpush1.msra.mxu0 0.0
    %180 = vmatprep.subr.mxu0 0.0
    %181 = vmatpush1.msra.mxu0 0.0
    %182 = vmatprep.subr.mxu0 0.0
    %183 = vmatpush1.msra.mxu0 0.0
    %184 = vmatprep.subr.mxu0 0.0
    %185 = vmatpush1.msra.mxu0 0.0
    %186 = vmatprep.subr.mxu0 0.0
    %187 = vmatpush1.msra.mxu0 0.0
    %188 = vmatprep.subr.mxu0 0.0
    %189 = vmatpush1.msra.mxu0 0.0
    %190 = vmatprep.subr.mxu0 0.0
    %191 = vmatpush1.msra.mxu0 0.0
    %192 = vmatprep.subr.mxu0 0.0
    %193 = vmatpush1.msra.mxu0 %v135
    %194 = vmatprep.subr.mxu0 0.0
    %195 = vmatpush1.msra.mxu0 %v134
    %196 = vmatprep.subr.mxu0 0.0
    %197 = vmatpush1.msra.mxu0 %v133
    %198 = vmatprep.subr.mxu0 0.0
    %199 = vmatpush1.msra.mxu0 %v132
    %200 = vmatprep.subr.mxu0 0.0
    %201 = vmatpush2.msra.mxu0 0.0
    %202 = vmatprep.subr.mxu0 0.0
    %203 = vmatpush2.msra.mxu0 0.0
    %204 = vmatprep.subr.mxu0 0.0
    %205 = vmatpush2.msra.mxu0 0.0
    %206 = vmatprep.subr.mxu0 0.0
    %207 = vmatpush2.msra.mxu0 0.0
    %208 = vmatprep.subr.mxu0 0.0
    %209 = vmatpush2.msra.mxu0 0.0
    %210 = vmatprep.subr.mxu0 0.0
    %211 = vmatpush2.msra.mxu0 0.0
    %212 = vmatprep.subr.mxu0 0.0
    %213 = vmatpush2.msra.mxu0 0.0
    %214 = vmatprep.subr.mxu0 0.0
    %215 = vmatpush2.msra.mxu0 0.0
    %216 = vmatprep.subr.mxu0 0.0
    %217 = vmatpush2.msra.mxu0 0.0
    %218 = vmatprep.subr.mxu0 0.0
    %219 = vmatpush2.msra.mxu0 0.0
    %220 = vmatprep.subr.mxu0 0.0
    %221 = vmatpush2.msra.mxu0 0.0
    %222 = vmatprep.subr.mxu0 0.0
    %223 = vmatpush2.msra.mxu0 0.0
    %224 = vmatprep.subr.mxu0 0.0
    %225 = vmatpush2.msra.mxu0 0.0
    %226 = vmatprep.subr.mxu0 0.0
    %227 = vmatpush2.msra.mxu0 0.0
    %228 = vmatprep.subr.mxu0 0.0
    %229 = vmatpush2.msra.mxu0 0.0
    %230 = vmatprep.subr.mxu0 0.0
    %231 = vmatpush2.msra.mxu0 0.0
    %232 = vmatprep.mubr.f32.mxu0 0.0
    %233 = vmatmul.mubr.f32.gmra.mxu0 %v145
    %v234 = vpop.f32.mrf.mxu0
    %v235 = vadd.f32 %v141, %v234
    %v236 = vpop.f32.mrf.mxu0
    %237 = vmatprep.mubr.f32.mxu0 0.0
    %238 = vmatmul.mubr.f32.gmra.mxu0 %v148
    %v239 = vpop.f32.mrf.mxu0
    %v240 = vadd.f32 %v141, %v239
    %v241 = vpop.f32.mrf.mxu0
    %242 = vmatprep.mubr.f32.mxu0 0.0
    %243 = vmatmul.mubr.f32.gmra.mxu0 %v151
    %v244 = vpop.f32.mrf.mxu0
    %v245 = vadd.f32 %v141, %v244
    %v246 = vpop.f32.mrf.mxu0
    %247 = vmatprep.mubr.f32.mxu0 0.0
    %248 = vmatmul.mubr.f32.gmra.mxu0 %v154
    %v249 = vpop.f32.mrf.mxu0
    %v250 = vadd.f32 %v141, %v249
    %v251 = vpop.f32.mrf.mxu0
    %252 = vmatprep.mubr.f32.mxu0 0.0
    %253 = vmatmul.mubr.f32.gmra.mxu0 %v157
    %v254 = vpop.f32.mrf.mxu0
    %v255 = vadd.f32 %v141, %v254
    %v256 = vpop.f32.mrf.mxu0
    %257 = vmatprep.mubr.f32.mxu0 0.0
    %258 = vmatmul.mubr.f32.gmra.mxu0 %v160
    %v259 = vpop.f32.mrf.mxu0
    %v260 = vadd.f32 %v141, %v259
    %v261 = vpop.f32.mrf.mxu0
    %262 = vmatprep.mubr.f32.mxu0 0.0
    %263 = vmatmul.mubr.f32.gmra.mxu0 %v163
    %v264 = vpop.f32.mrf.mxu0
    %v265 = vadd.f32 %v141, %v264
    %v266 = vpop.f32.mrf.mxu0
    %267 = vmatprep.mubr.f32.mxu0 0.0
    %268 = vmatmul.mubr.f32.gmra.mxu0 %v166
    %v269 = vpop.f32.mrf.mxu0
    %v270 = vadd.f32 %v141, %v269
    %v271 = vpop.f32.mrf.mxu0
    %272 = vdwg.mxu0
    %273 = vst [vmem:[#allocation2] sm:$0xff] %v235
    %274 = vst [vmem:[#allocation2 + $0x8] sm:$0xff] %v240
    %275 = vst [vmem:[#allocation2 + $0x10] sm:$0xff] %v245
    %276 = vst [vmem:[#allocation2 + $0x18] sm:$0xff] %v250
    %277 = vst [vmem:[#allocation2 + $0x20] sm:$0xff] %v255
    %278 = vst [vmem:[#allocation2 + $0x28] sm:$0xff] %v260
    %279 = vst [vmem:[#allocation2 + $0x30] sm:$0xff] %v265
    %280 = vst [vmem:[#allocation2 + $0x38] sm:$0xff] %v270
    %v281 = vld [vmem:[#allocation8] sm:$0xff]
    %v282 = vld [vmem:[#allocation8 + $0x8] sm:$0xff]
    %v283 = vld [vmem:[#allocation8 + $0x10] sm:$0xff]
    %v284 = vld [vmem:[#allocation8 + $0x18] sm:$0xff]
    %v285 = vld [vmem:[#allocation8 + $0x20] sm:$0xff]
    %v286 = vld [vmem:[#allocation8 + $0x28] sm:$0xff]
    %v287 = vld [vmem:[#allocation8 + $0x30] sm:$0xff]
    %v288 = vld [vmem:[#allocation8 + $0x38] sm:$0xff]
    %v289 = vld [vmem:[#allocation8 + $0x40] sm:$0xff]
    %v290 = vld [vmem:[#allocation8 + $0x48] sm:$0xff]
    %v291 = vld [vmem:[#allocation8 + $0x50] sm:$0xff]
    %v292 = vld [vmem:[#allocation8 + $0x58] sm:$0xff]
    %v293 = vld [vmem:[#allocation8 + $0x60] sm:$0xff]
    %v294 = vld [vmem:[#allocation8 + $0x68] sm:$0xff]
    %v295 = vld [vmem:[#allocation8 + $0x70] sm:$0xff]
    %v296 = vld [vmem:[#allocation8 + $0x78] sm:$0xff]
    %v297 = vld [vmem:[#allocation2] sm:$0xff]
    %v298 = vld [vmem:[#allocation2 + $0x38] sm:$0xff]
    %v299 = vsel %vm123, %v297, %v298
    %300 = vmatprep.subr.mxu0 0.0
    %301 = vmatpush1.msra.mxu0 %v296
    %302 = vmatprep.subr.mxu0 0.0
    %303 = vmatpush1.msra.mxu0 %v295
    %304 = vmatprep.subr.mxu0 0.0
    %305 = vmatpush1.msra.mxu0 %v294
    %306 = vmatprep.subr.mxu0 0.0
    %307 = vmatpush1.msra.mxu0 %v293
    %308 = vmatprep.subr.mxu0 0.0
    %309 = vmatpush1.msra.mxu0 %v292
    %310 = vmatprep.subr.mxu0 0.0
    %311 = vmatpush1.msra.mxu0 %v291
    %312 = vmatprep.subr.mxu0 0.0
    %313 = vmatpush1.msra.mxu0 %v290
    %314 = vmatprep.subr.mxu0 0.0
    %315 = vmatpush1.msra.mxu0 %v289
    %316 = vmatprep.subr.mxu0 0.0
    %317 = vmatpush1.msra.mxu0 %v288
    %318 = vmatprep.subr.mxu0 0.0
    %319 = vmatpush1.msra.mxu0 %v287
    %320 = vmatprep.subr.mxu0 0.0
    %321 = vmatpush1.msra.mxu0 %v286
    %322 = vmatprep.subr.mxu0 0.0
    %323 = vmatpush1.msra.mxu0 %v285
    %324 = vmatprep.subr.mxu0 0.0
    %325 = vmatpush1.msra.mxu0 %v284
    %326 = vmatprep.subr.mxu0 0.0
    %327 = vmatpush1.msra.mxu0 %v283
    %328 = vmatprep.subr.mxu0 0.0
    %329 = vmatpush1.msra.mxu0 %v282
    %330 = vmatprep.subr.mxu0 0.0
    %331 = vmatpush1.msra.mxu0 %v281
    %332 = vmatprep.subr.mxu0 0.0
    %333 = vmatpush2.msra.mxu0 0.0
    %334 = vmatprep.subr.mxu0 0.0
    %335 = vmatpush2.msra.mxu0 0.0
    %336 = vmatprep.subr.mxu0 0.0
    %337 = vmatpush2.msra.mxu0 0.0
    %338 = vmatprep.subr.mxu0 0.0
    %339 = vmatpush2.msra.mxu0 0.0
    %340 = vmatprep.subr.mxu0 0.0
    %341 = vmatpush2.msra.mxu0 0.0
    %342 = vmatprep.subr.mxu0 0.0
    %343 = vmatpush2.msra.mxu0 0.0
    %344 = vmatprep.subr.mxu0 0.0
    %345 = vmatpush2.msra.mxu0 0.0
    %346 = vmatprep.subr.mxu0 0.0
    %347 = vmatpush2.msra.mxu0 0.0
    %348 = vmatprep.subr.mxu0 0.0
    %349 = vmatpush2.msra.mxu0 0.0
    %350 = vmatprep.subr.mxu0 0.0
    %351 = vmatpush2.msra.mxu0 0.0
    %352 = vmatprep.subr.mxu0 0.0
    %353 = vmatpush2.msra.mxu0 0.0
    %354 = vmatprep.subr.mxu0 0.0
    %355 = vmatpush2.msra.mxu0 0.0
    %356 = vmatprep.subr.mxu0 0.0
    %357 = vmatpush2.msra.mxu0 0.0
    %358 = vmatprep.subr.mxu0 0.0
    %359 = vmatpush2.msra.mxu0 0.0
    %360 = vmatprep.subr.mxu0 0.0
    %361 = vmatpush2.msra.mxu0 0.0
    %362 = vmatprep.subr.mxu0 0.0
    %363 = vmatpush2.msra.mxu0 0.0
    %364 = vmatprep.mubr.f32.mxu0 0.0
    %365 = vmatmul.mubr.f32.gmra.mxu0 0.0
    %v366 = vpop.f32.mrf.mxu0
    %v367 = vadd.f32 0.0, %v366
    %v368 = vpop.f32.mrf.mxu0
    %369 = vdwg.mxu0
    %v370 = vadd.f32 %v299, %v367
    %v371 = vmax.f32 %v370, 0.0
    %372 = vst [vmem:[#allocation3] sm:$0xff] %v371
    %v373 = vld [vmem:[#allocation2 + $0x8] sm:$0xff]
    %v374 = vld [vmem:[#allocation2 + $0x30] sm:$0xff]
    %v375 = vsel %vm123, %v373, %v374
    %376 = vmatprep.subr.mxu0 0.0
    %377 = vmatpush1.msra.mxu0 %v296
    %378 = vmatprep.subr.mxu0 0.0
    %379 = vmatpush1.msra.mxu0 %v295
    %380 = vmatprep.subr.mxu0 0.0
    %381 = vmatpush1.msra.mxu0 %v294
    %382 = vmatprep.subr.mxu0 0.0
    %383 = vmatpush1.msra.mxu0 %v293
    %384 = vmatprep.subr.mxu0 0.0
    %385 = vmatpush1.msra.mxu0 %v292
    %386 = vmatprep.subr.mxu0 0.0
    %387 = vmatpush1.msra.mxu0 %v291
    %388 = vmatprep.subr.mxu0 0.0
    %389 = vmatpush1.msra.mxu0 %v290
    %390 = vmatprep.subr.mxu0 0.0
    %391 = vmatpush1.msra.mxu0 %v289
    %392 = vmatprep.subr.mxu0 0.0
    %393 = vmatpush1.msra.mxu0 %v288
    %394 = vmatprep.subr.mxu0 0.0
    %395 = vmatpush1.msra.mxu0 %v287
    %396 = vmatprep.subr.mxu0 0.0
    %397 = vmatpush1.msra.mxu0 %v286
    %398 = vmatprep.subr.mxu0 0.0
    %399 = vmatpush1.msra.mxu0 %v285
    %400 = vmatprep.subr.mxu0 0.0
    %401 = vmatpush1.msra.mxu0 %v284
    %402 = vmatprep.subr.mxu0 0.0
    %403 = vmatpush1.msra.mxu0 %v283
    %404 = vmatprep.subr.mxu0 0.0
    %405 = vmatpush1.msra.mxu0 %v282
    %406 = vmatprep.subr.mxu0 0.0
    %407 = vmatpush1.msra.mxu0 %v281
    %408 = vmatprep.subr.mxu0 0.0
    %409 = vmatpush2.msra.mxu0 0.0
    %410 = vmatprep.subr.mxu0 0.0
    %411 = vmatpush2.msra.mxu0 0.0
    %412 = vmatprep.subr.mxu0 0.0
    %413 = vmatpush2.msra.mxu0 0.0
    %414 = vmatprep.subr.mxu0 0.0
    %415 = vmatpush2.msra.mxu0 0.0
    %416 = vmatprep.subr.mxu0 0.0
    %417 = vmatpush2.msra.mxu0 0.0
    %418 = vmatprep.subr.mxu0 0.0
    %419 = vmatpush2.msra.mxu0 0.0
    %420 = vmatprep.subr.mxu0 0.0
    %421 = vmatpush2.msra.mxu0 0.0
    %422 = vmatprep.subr.mxu0 0.0
    %423 = vmatpush2.msra.mxu0 0.0
    %424 = vmatprep.subr.mxu0 0.0
    %425 = vmatpush2.msra.mxu0 0.0
    %426 = vmatprep.subr.mxu0 0.0
    %427 = vmatpush2.msra.mxu0 0.0
    %428 = vmatprep.subr.mxu0 0.0
    %429 = vmatpush2.msra.mxu0 0.0
    %430 = vmatprep.subr.mxu0 0.0
    %431 = vmatpush2.msra.mxu0 0.0
    %432 = vmatprep.subr.mxu0 0.0
    %433 = vmatpush2.msra.mxu0 0.0
    %434 = vmatprep.subr.mxu0 0.0
    %435 = vmatpush2.msra.mxu0 0.0
    %436 = vmatprep.subr.mxu0 0.0
    %437 = vmatpush2.msra.mxu0 0.0
    %438 = vmatprep.subr.mxu0 0.0
    %439 = vmatpush2.msra.mxu0 0.0
    %440 = vmatprep.mubr.f32.mxu0 0.0
    %441 = vmatmul.mubr.f32.gmra.mxu0 %v371
    %v442 = vpop.f32.mrf.mxu0
    %v443 = vadd.f32 0.0, %v442
    %v444 = vpop.f32.mrf.mxu0
    %445 = vdwg.mxu0
    %v446 = vadd.f32 %v375, %v443
    %v447 = vmax.f32 %v446, 0.0
    %448 = vst [vmem:[#allocation3 + $0x8] sm:$0xff] %v447
    %v449 = vld [vmem:[#allocation2 + $0x10] sm:$0xff]
    %v450 = vld [vmem:[#allocation2 + $0x28] sm:$0xff]
    %v451 = vsel %vm123, %v449, %v450
    %452 = vmatprep.subr.mxu0 0.0
    %453 = vmatpush1.msra.mxu0 %v296
    %454 = vmatprep.subr.mxu0 0.0
    %455 = vmatpush1.msra.mxu0 %v295
    %456 = vmatprep.subr.mxu0 0.0
    %457 = vmatpush1.msra.mxu0 %v294
    %458 = vmatprep.subr.mxu0 0.0
    %459 = vmatpush1.msra.mxu0 %v293
    %460 = vmatprep.subr.mxu0 0.0
    %461 = vmatpush1.msra.mxu0 %v292
    %462 = vmatprep.subr.mxu0 0.0
    %463 = vmatpush1.msra.mxu0 %v291
    %464 = vmatprep.subr.mxu0 0.0
    %465 = vmatpush1.msra.mxu0 %v290
    %466 = vmatprep.subr.mxu0 0.0
    %467 = vmatpush1.msra.mxu0 %v289
    %468 = vmatprep.subr.mxu0 0.0
    %469 = vmatpush1.msra.mxu0 %v288
    %470 = vmatprep.subr.mxu0 0.0
    %471 = vmatpush1.msra.mxu0 %v287
    %472 = vmatprep.subr.mxu0 0.0
    %473 = vmatpush1.msra.mxu0 %v286
    %474 = vmatprep.subr.mxu0 0.0
    %475 = vmatpush1.msra.mxu0 %v285
    %476 = vmatprep.subr.mxu0 0.0
    %477 = vmatpush1.msra.mxu0 %v284
    %478 = vmatprep.subr.mxu0 0.0
    %479 = vmatpush1.msra.mxu0 %v283
    %480 = vmatprep.subr.mxu0 0.0
    %481 = vmatpush1.msra.mxu0 %v282
    %482 = vmatprep.subr.mxu0 0.0
    %483 = vmatpush1.msra.mxu0 %v281
    %484 = vmatprep.subr.mxu0 0.0
    %485 = vmatpush2.msra.mxu0 0.0
    %486 = vmatprep.subr.mxu0 0.0
    %487 = vmatpush2.msra.mxu0 0.0
    %488 = vmatprep.subr.mxu0 0.0
    %489 = vmatpush2.msra.mxu0 0.0
    %490 = vmatprep.subr.mxu0 0.0
    %491 = vmatpush2.msra.mxu0 0.0
    %492 = vmatprep.subr.mxu0 0.0
    %493 = vmatpush2.msra.mxu0 0.0
    %494 = vmatprep.subr.mxu0 0.0
    %495 = vmatpush2.msra.mxu0 0.0
    %496 = vmatprep.subr.mxu0 0.0
    %497 = vmatpush2.msra.mxu0 0.0
    %498 = vmatprep.subr.mxu0 0.0
    %499 = vmatpush2.msra.mxu0 0.0
    %500 = vmatprep.subr.mxu0 0.0
    %501 = vmatpush2.msra.mxu0 0.0
    %502 = vmatprep.subr.mxu0 0.0
    %503 = vmatpush2.msra.mxu0 0.0
    %504 = vmatprep.subr.mxu0 0.0
    %505 = vmatpush2.msra.mxu0 0.0
    %506 = vmatprep.subr.mxu0 0.0
    %507 = vmatpush2.msra.mxu0 0.0
    %508 = vmatprep.subr.mxu0 0.0
    %509 = vmatpush2.msra.mxu0 0.0
    %510 = vmatprep.subr.mxu0 0.0
    %511 = vmatpush2.msra.mxu0 0.0
    %512 = vmatprep.subr.mxu0 0.0
    %513 = vmatpush2.msra.mxu0 0.0
    %514 = vmatprep.subr.mxu0 0.0
    %515 = vmatpush2.msra.mxu0 0.0
    %516 = vmatprep.mubr.f32.mxu0 0.0
    %517 = vmatmul.mubr.f32.gmra.mxu0 %v447
    %v518 = vpop.f32.mrf.mxu0
    %v519 = vadd.f32 0.0, %v518
    %v520 = vpop.f32.mrf.mxu0
    %521 = vdwg.mxu0
    %v522 = vadd.f32 %v451, %v519
    %v523 = vmax.f32 %v522, 0.0
    %524 = vst [vmem:[#allocation3 + $0x10] sm:$0xff] %v523
    %v525 = vld [vmem:[#allocation2 + $0x18] sm:$0xff]
    %v526 = vld [vmem:[#allocation2 + $0x20] sm:$0xff]
    %v527 = vsel %vm123, %v525, %v526
    %528 = vmatprep.subr.mxu0 0.0
    %529 = vmatpush1.msra.mxu0 %v296
    %530 = vmatprep.subr.mxu0 0.0
    %531 = vmatpush1.msra.mxu0 %v295
    %532 = vmatprep.subr.mxu0 0.0
    %533 = vmatpush1.msra.mxu0 %v294
    %534 = vmatprep.subr.mxu0 0.0
    %535 = vmatpush1.msra.mxu0 %v293
    %536 = vmatprep.subr.mxu0 0.0
    %537 = vmatpush1.msra.mxu0 %v292
    %538 = vmatprep.subr.mxu0 0.0
    %539 = vmatpush1.msra.mxu0 %v291
    %540 = vmatprep.subr.mxu0 0.0
    %541 = vmatpush1.msra.mxu0 %v290
    %542 = vmatprep.subr.mxu0 0.0
    %543 = vmatpush1.msra.mxu0 %v289
    %544 = vmatprep.subr.mxu0 0.0
    %545 = vmatpush1.msra.mxu0 %v288
    %546 = vmatprep.subr.mxu0 0.0
    %547 = vmatpush1.msra.mxu0 %v287
    %548 = vmatprep.subr.mxu0 0.0
    %549 = vmatpush1.msra.mxu0 %v286
    %550 = vmatprep.subr.mxu0 0.0
    %551 = vmatpush1.msra.mxu0 %v285
    %552 = vmatprep.subr.mxu0 0.0
    %553 = vmatpush1.msra.mxu0 %v284
    %554 = vmatprep.subr.mxu0 0.0
    %555 = vmatpush1.msra.mxu0 %v283
    %556 = vmatprep.subr.mxu0 0.0
    %557 = vmatpush1.msra.mxu0 %v282
    %558 = vmatprep.subr.mxu0 0.0
    %559 = vmatpush1.msra.mxu0 %v281
    %560 = vmatprep.subr.mxu0 0.0
    %561 = vmatpush2.msra.mxu0 0.0
    %562 = vmatprep.subr.mxu0 0.0
    %563 = vmatpush2.msra.mxu0 0.0
    %564 = vmatprep.subr.mxu0 0.0
    %565 = vmatpush2.msra.mxu0 0.0
    %566 = vmatprep.subr.mxu0 0.0
    %567 = vmatpush2.msra.mxu0 0.0
    %568 = vmatprep.subr.mxu0 0.0
    %569 = vmatpush2.msra.mxu0 0.0
    %570 = vmatprep.subr.mxu0 0.0
    %571 = vmatpush2.msra.mxu0 0.0
    %572 = vmatprep.subr.mxu0 0.0
    %573 = vmatpush2.msra.mxu0 0.0
    %574 = vmatprep.subr.mxu0 0.0
    %575 = vmatpush2.msra.mxu0 0.0
    %576 = vmatprep.subr.mxu0 0.0
    %577 = vmatpush2.msra.mxu0 0.0
    %578 = vmatprep.subr.mxu0 0.0
    %579 = vmatpush2.msra.mxu0 0.0
    %580 = vmatprep.subr.mxu0 0.0
    %581 = vmatpush2.msra.mxu0 0.0
    %582 = vmatprep.subr.mxu0 0.0
    %583 = vmatpush2.msra.mxu0 0.0
    %584 = vmatprep.subr.mxu0 0.0
    %585 = vmatpush2.msra.mxu0 0.0
    %586 = vmatprep.subr.mxu0 0.0
    %587 = vmatpush2.msra.mxu0 0.0
    %588 = vmatprep.subr.mxu0 0.0
    %589 = vmatpush2.msra.mxu0 0.0
    %590 = vmatprep.subr.mxu0 0.0
    %591 = vmatpush2.msra.mxu0 0.0
    %592 = vmatprep.mubr.f32.mxu0 0.0
    %593 = vmatmul.mubr.f32.gmra.mxu0 %v523
    %v594 = vpop.f32.mrf.mxu0
    %v595 = vadd.f32 0.0, %v594
    %v596 = vpop.f32.mrf.mxu0
    %597 = vdwg.mxu0
    %v598 = vadd.f32 %v527, %v595
    %v599 = vmax.f32 %v598, 0.0
    %600 = vst [vmem:[#allocation3 + $0x18] sm:$0xff] %v599
    %v601 = vld [vmem:[#allocation2 + $0x20] sm:$0xff]
    %v602 = vld [vmem:[#allocation2 + $0x18] sm:$0xff]
    %v603 = vsel %vm123, %v601, %v602
    %604 = vmatprep.subr.mxu0 0.0
    %605 = vmatpush1.msra.mxu0 %v296
    %606 = vmatprep.subr.mxu0 0.0
    %607 = vmatpush1.msra.mxu0 %v295
    %608 = vmatprep.subr.mxu0 0.0
    %609 = vmatpush1.msra.mxu0 %v294
    %610 = vmatprep.subr.mxu0 0.0
    %611 = vmatpush1.msra.mxu0 %v293
    %612 = vmatprep.subr.mxu0 0.0
    %613 = vmatpush1.msra.mxu0 %v292
    %614 = vmatprep.subr.mxu0 0.0
    %615 = vmatpush1.msra.mxu0 %v291
    %616 = vmatprep.subr.mxu0 0.0
    %617 = vmatpush1.msra.mxu0 %v290
    %618 = vmatprep.subr.mxu0 0.0
    %619 = vmatpush1.msra.mxu0 %v289
    %620 = vmatprep.subr.mxu0 0.0
    %621 = vmatpush1.msra.mxu0 %v288
    %622 = vmatprep.subr.mxu0 0.0
    %623 = vmatpush1.msra.mxu0 %v287
    %624 = vmatprep.subr.mxu0 0.0
    %625 = vmatpush1.msra.mxu0 %v286
    %626 = vmatprep.subr.mxu0 0.0
    %627 = vmatpush1.msra.mxu0 %v285
    %628 = vmatprep.subr.mxu0 0.0
    %629 = vmatpush1.msra.mxu0 %v284
    %630 = vmatprep.subr.mxu0 0.0
    %631 = vmatpush1.msra.mxu0 %v283
    %632 = vmatprep.subr.mxu0 0.0
    %633 = vmatpush1.msra.mxu0 %v282
    %634 = vmatprep.subr.mxu0 0.0
    %635 = vmatpush1.msra.mxu0 %v281
    %636 = vmatprep.subr.mxu0 0.0
    %637 = vmatpush2.msra.mxu0 0.0
    %638 = vmatprep.subr.mxu0 0.0
    %639 = vmatpush2.msra.mxu0 0.0
    %640 = vmatprep.subr.mxu0 0.0
    %641 = vmatpush2.msra.mxu0 0.0
    %642 = vmatprep.subr.mxu0 0.0
    %643 = vmatpush2.msra.mxu0 0.0
    %644 = vmatprep.subr.mxu0 0.0
    %645 = vmatpush2.msra.mxu0 0.0
    %646 = vmatprep.subr.mxu0 0.0
    %647 = vmatpush2.msra.mxu0 0.0
    %648 = vmatprep.subr.mxu0 0.0
    %649 = vmatpush2.msra.mxu0 0.0
    %650 = vmatprep.subr.mxu0 0.0
    %651 = vmatpush2.msra.mxu0 0.0
    %652 = vmatprep.subr.mxu0 0.0
    %653 = vmatpush2.msra.mxu0 0.0
    %654 = vmatprep.subr.mxu0 0.0
    %655 = vmatpush2.msra.mxu0 0.0
    %656 = vmatprep.subr.mxu0 0.0
    %657 = vmatpush2.msra.mxu0 0.0
    %658 = vmatprep.subr.mxu0 0.0
    %659 = vmatpush2.msra.mxu0 0.0
    %660 = vmatprep.subr.mxu0 0.0
    %661 = vmatpush2.msra.mxu0 0.0
    %662 = vmatprep.subr.mxu0 0.0
    %663 = vmatpush2.msra.mxu0 0.0
    %664 = vmatprep.subr.mxu0 0.0
    %665 = vmatpush2.msra.mxu0 0.0
    %666 = vmatprep.subr.mxu0 0.0
    %667 = vmatpush2.msra.mxu0 0.0
    %668 = vmatprep.mubr.f32.mxu0 0.0
    %669 = vmatmul.mubr.f32.gmra.mxu0 %v599
    %v670 = vpop.f32.mrf.mxu0
    %v671 = vadd.f32 0.0, %v670
    %v672 = vpop.f32.mrf.mxu0
    %673 = vdwg.mxu0
    %v674 = vadd.f32 %v603, %v671
    %v675 = vmax.f32 %v674, 0.0
    %676 = vst [vmem:[#allocation3 + $0x20] sm:$0xff] %v675
    %v677 = vld [vmem:[#allocation2 + $0x28] sm:$0xff]
    %v678 = vld [vmem:[#allocation2 + $0x10] sm:$0xff]
    %v679 = vsel %vm123, %v677, %v678
    %680 = vmatprep.subr.mxu0 0.0
    %681 = vmatpush1.msra.mxu0 %v296
    %682 = vmatprep.subr.mxu0 0.0
    %683 = vmatpush1.msra.mxu0 %v295
    %684 = vmatprep.subr.mxu0 0.0
    %685 = vmatpush1.msra.mxu0 %v294
    %686 = vmatprep.subr.mxu0 0.0
    %687 = vmatpush1.msra.mxu0 %v293
    %688 = vmatprep.subr.mxu0 0.0
    %689 = vmatpush1.msra.mxu0 %v292
    %690 = vmatprep.subr.mxu0 0.0
    %691 = vmatpush1.msra.mxu0 %v291
    %692 = vmatprep.subr.mxu0 0.0
    %693 = vmatpush1.msra.mxu0 %v290
    %694 = vmatprep.subr.mxu0 0.0
    %695 = vmatpush1.msra.mxu0 %v289
    %696 = vmatprep.subr.mxu0 0.0
    %697 = vmatpush1.msra.mxu0 %v288
    %698 = vmatprep.subr.mxu0 0.0
    %699 = vmatpush1.msra.mxu0 %v287
    %700 = vmatprep.subr.mxu0 0.0
    %701 = vmatpush1.msra.mxu0 %v286
    %702 = vmatprep.subr.mxu0 0.0
    %703 = vmatpush1.msra.mxu0 %v285
    %704 = vmatprep.subr.mxu0 0.0
    %705 = vmatpush1.msra.mxu0 %v284
    %706 = vmatprep.subr.mxu0 0.0
    %707 = vmatpush1.msra.mxu0 %v283
    %708 = vmatprep.subr.mxu0 0.0
    %709 = vmatpush1.msra.mxu0 %v282
    %710 = vmatprep.subr.mxu0 0.0
    %711 = vmatpush1.msra.mxu0 %v281
    %712 = vmatprep.subr.mxu0 0.0
    %713 = vmatpush2.msra.mxu0 0.0
    %714 = vmatprep.subr.mxu0 0.0
    %715 = vmatpush2.msra.mxu0 0.0
    %716 = vmatprep.subr.mxu0 0.0
    %717 = vmatpush2.msra.mxu0 0.0
    %718 = vmatprep.subr.mxu0 0.0
    %719 = vmatpush2.msra.mxu0 0.0
    %720 = vmatprep.subr.mxu0 0.0
    %721 = vmatpush2.msra.mxu0 0.0
    %722 = vmatprep.subr.mxu0 0.0
    %723 = vmatpush2.msra.mxu0 0.0
    %724 = vmatprep.subr.mxu0 0.0
    %725 = vmatpush2.msra.mxu0 0.0
    %726 = vmatprep.subr.mxu0 0.0
    %727 = vmatpush2.msra.mxu0 0.0
    %728 = vmatprep.subr.mxu0 0.0
    %729 = vmatpush2.msra.mxu0 0.0
    %730 = vmatprep.subr.mxu0 0.0
    %731 = vmatpush2.msra.mxu0 0.0
    %732 = vmatprep.subr.mxu0 0.0
    %733 = vmatpush2.msra.mxu0 0.0
    %734 = vmatprep.subr.mxu0 0.0
    %735 = vmatpush2.msra.mxu0 0.0
    %736 = vmatprep.subr.mxu0 0.0
    %737 = vmatpush2.msra.mxu0 0.0
    %738 = vmatprep.subr.mxu0 0.0
    %739 = vmatpush2.msra.mxu0 0.0
    %740 = vmatprep.subr.mxu0 0.0
    %741 = vmatpush2.msra.mxu0 0.0
    %742 = vmatprep.subr.mxu0 0.0
    %743 = vmatpush2.msra.mxu0 0.0
    %744 = vmatprep.mubr.f32.mxu0 0.0
    %745 = vmatmul.mubr.f32.gmra.mxu0 %v675
    %v746 = vpop.f32.mrf.mxu0
    %v747 = vadd.f32 0.0, %v746
    %v748 = vpop.f32.mrf.mxu0
    %749 = vdwg.mxu0
    %v750 = vadd.f32 %v679, %v747
    %v751 = vmax.f32 %v750, 0.0
    %752 = vst [vmem:[#allocation3 + $0x28] sm:$0xff] %v751
    %v753 = vld [vmem:[#allocation2 + $0x30] sm:$0xff]
    %v754 = vld [vmem:[#allocation2 + $0x8] sm:$0xff]
    %v755 = vsel %vm123, %v753, %v754
    %756 = vmatprep.subr.mxu0 0.0
    %757 = vmatpush1.msra.mxu0 %v296
    %758 = vmatprep.subr.mxu0 0.0
    %759 = vmatpush1.msra.mxu0 %v295
    %760 = vmatprep.subr.mxu0 0.0
    %761 = vmatpush1.msra.mxu0 %v294
    %762 = vmatprep.subr.mxu0 0.0
    %763 = vmatpush1.msra.mxu0 %v293
    %764 = vmatprep.subr.mxu0 0.0
    %765 = vmatpush1.msra.mxu0 %v292
    %766 = vmatprep.subr.mxu0 0.0
    %767 = vmatpush1.msra.mxu0 %v291
    %768 = vmatprep.subr.mxu0 0.0
    %769 = vmatpush1.msra.mxu0 %v290
    %770 = vmatprep.subr.mxu0 0.0
    %771 = vmatpush1.msra.mxu0 %v289
    %772 = vmatprep.subr.mxu0 0.0
    %773 = vmatpush1.msra.mxu0 %v288
    %774 = vmatprep.subr.mxu0 0.0
    %775 = vmatpush1.msra.mxu0 %v287
    %776 = vmatprep.subr.mxu0 0.0
    %777 = vmatpush1.msra.mxu0 %v286
    %778 = vmatprep.subr.mxu0 0.0
    %779 = vmatpush1.msra.mxu0 %v285
    %780 = vmatprep.subr.mxu0 0.0
    %781 = vmatpush1.msra.mxu0 %v284
    %782 = vmatprep.subr.mxu0 0.0
    %783 = vmatpush1.msra.mxu0 %v283
    %784 = vmatprep.subr.mxu0 0.0
    %785 = vmatpush1.msra.mxu0 %v282
    %786 = vmatprep.subr.mxu0 0.0
    %787 = vmatpush1.msra.mxu0 %v281
    %788 = vmatprep.subr.mxu0 0.0
    %789 = vmatpush2.msra.mxu0 0.0
    %790 = vmatprep.subr.mxu0 0.0
    %791 = vmatpush2.msra.mxu0 0.0
    %792 = vmatprep.subr.mxu0 0.0
    %793 = vmatpush2.msra.mxu0 0.0
    %794 = vmatprep.subr.mxu0 0.0
    %795 = vmatpush2.msra.mxu0 0.0
    %796 = vmatprep.subr.mxu0 0.0
    %797 = vmatpush2.msra.mxu0 0.0
    %798 = vmatprep.subr.mxu0 0.0
    %799 = vmatpush2.msra.mxu0 0.0
    %800 = vmatprep.subr.mxu0 0.0
    %801 = vmatpush2.msra.mxu0 0.0
    %802 = vmatprep.subr.mxu0 0.0
    %803 = vmatpush2.msra.mxu0 0.0
    %804 = vmatprep.subr.mxu0 0.0
    %805 = vmatpush2.msra.mxu0 0.0
    %806 = vmatprep.subr.mxu0 0.0
    %807 = vmatpush2.msra.mxu0 0.0
    %808 = vmatprep.subr.mxu0 0.0
    %809 = vmatpush2.msra.mxu0 0.0
    %810 = vmatprep.subr.mxu0 0.0
    %811 = vmatpush2.msra.mxu0 0.0
    %812 = vmatprep.subr.mxu0 0.0
    %813 = vmatpush2.msra.mxu0 0.0
    %814 = vmatprep.subr.mxu0 0.0
    %815 = vmatpush2.msra.mxu0 0.0
    %816 = vmatprep.subr.mxu0 0.0
    %817 = vmatpush2.msra.mxu0 0.0
    %818 = vmatprep.subr.mxu0 0.0
    %819 = vmatpush2.msra.mxu0 0.0
    %820 = vmatprep.mubr.f32.mxu0 0.0
    %821 = vmatmul.mubr.f32.gmra.mxu0 %v751
    %v822 = vpop.f32.mrf.mxu0
    %v823 = vadd.f32 0.0, %v822
    %v824 = vpop.f32.mrf.mxu0
    %825 = vdwg.mxu0
    %v826 = vadd.f32 %v755, %v823
    %v827 = vmax.f32 %v826, 0.0
    %828 = vst [vmem:[#allocation3 + $0x30] sm:$0xff] %v827
    %v829 = vld [vmem:[#allocation2 + $0x38] sm:$0xff]
    %v830 = vld [vmem:[#allocation2] sm:$0xff]
    %v831 = vsel %vm123, %v829, %v830
    %832 = vmatprep.subr.mxu0 0.0
    %833 = vmatpush1.msra.mxu0 %v296
    %834 = vmatprep.subr.mxu0 0.0
    %835 = vmatpush1.msra.mxu0 %v295
    %836 = vmatprep.subr.mxu0 0.0
    %837 = vmatpush1.msra.mxu0 %v294
    %838 = vmatprep.subr.mxu0 0.0
    %839 = vmatpush1.msra.mxu0 %v293
    %840 = vmatprep.subr.mxu0 0.0
    %841 = vmatpush1.msra.mxu0 %v292
    %842 = vmatprep.subr.mxu0 0.0
    %843 = vmatpush1.msra.mxu0 %v291
    %844 = vmatprep.subr.mxu0 0.0
    %845 = vmatpush1.msra.mxu0 %v290
    %846 = vmatprep.subr.mxu0 0.0
    %847 = vmatpush1.msra.mxu0 %v289
    %848 = vmatprep.subr.mxu0 0.0
    %849 = vmatpush1.msra.mxu0 %v288
    %850 = vmatprep.subr.mxu0 0.0
    %851 = vmatpush1.msra.mxu0 %v287
    %852 = vmatprep.subr.mxu0 0.0
    %853 = vmatpush1.msra.mxu0 %v286
    %854 = vmatprep.subr.mxu0 0.0
    %855 = vmatpush1.msra.mxu0 %v285
    %856 = vmatprep.subr.mxu0 0.0
    %857 = vmatpush1.msra.mxu0 %v284
    %858 = vmatprep.subr.mxu0 0.0
    %859 = vmatpush1.msra.mxu0 %v283
    %860 = vmatprep.subr.mxu0 0.0
    %861 = vmatpush1.msra.mxu0 %v282
    %862 = vmatprep.subr.mxu0 0.0
    %863 = vmatpush1.msra.mxu0 %v281
    %864 = vmatprep.subr.mxu0 0.0
    %865 = vmatpush2.msra.mxu0 0.0
    %866 = vmatprep.subr.mxu0 0.0
    %867 = vmatpush2.msra.mxu0 0.0
    %868 = vmatprep.subr.mxu0 0.0
    %869 = vmatpush2.msra.mxu0 0.0
    %870 = vmatprep.subr.mxu0 0.0
    %871 = vmatpush2.msra.mxu0 0.0
    %872 = vmatprep.subr.mxu0 0.0
    %873 = vmatpush2.msra.mxu0 0.0
    %874 = vmatprep.subr.mxu0 0.0
    %875 = vmatpush2.msra.mxu0 0.0
    %876 = vmatprep.subr.mxu0 0.0
    %877 = vmatpush2.msra.mxu0 0.0
    %878 = vmatprep.subr.mxu0 0.0
    %879 = vmatpush2.msra.mxu0 0.0
    %880 = vmatprep.subr.mxu0 0.0
    %881 = vmatpush2.msra.mxu0 0.0
    %882 = vmatprep.subr.mxu0 0.0
    %883 = vmatpush2.msra.mxu0 0.0
    %884 = vmatprep.subr.mxu0 0.0
    %885 = vmatpush2.msra.mxu0 0.0
    %886 = vmatprep.subr.mxu0 0.0
    %887 = vmatpush2.msra.mxu0 0.0
    %888 = vmatprep.subr.mxu0 0.0
    %889 = vmatpush2.msra.mxu0 0.0
    %890 = vmatprep.subr.mxu0 0.0
    %891 = vmatpush2.msra.mxu0 0.0
    %892 = vmatprep.subr.mxu0 0.0
    %893 = vmatpush2.msra.mxu0 0.0
    %894 = vmatprep.subr.mxu0 0.0
    %895 = vmatpush2.msra.mxu0 0.0
    %896 = vmatprep.mubr.f32.mxu0 0.0
    %897 = vmatmul.mubr.f32.gmra.mxu0 %v827
    %v898 = vpop.f32.mrf.mxu0
    %v899 = vadd.f32 0.0, %v898
    %v900 = vpop.f32.mrf.mxu0
    %901 = vdwg.mxu0
    %v902 = vadd.f32 %v831, %v899
    %v903 = vmax.f32 %v902, 0.0
    %904 = vst [vmem:[#allocation3 + $0x38] sm:$0xff] %v903
    %v905 = vld [vmem:[#allocation3] sm:$0xff]
    %v906 = vld [vmem:[#allocation3 + $0x38] sm:$0xff]
    %v907 = vsel %vm123, %v905, %v906
    %908 = vst [vmem:[#allocation2] sm:$0xff] %v907
    %v909 = vld [vmem:[#allocation3 + $0x8] sm:$0xff]
    %v910 = vld [vmem:[#allocation3 + $0x30] sm:$0xff]
    %v911 = vsel %vm123, %v909, %v910
    %912 = vst [vmem:[#allocation2 + $0x8] sm:$0xff] %v911
    %v913 = vld [vmem:[#allocation3 + $0x10] sm:$0xff]
    %v914 = vld [vmem:[#allocation3 + $0x28] sm:$0xff]
    %v915 = vsel %vm123, %v913, %v914
    %916 = vst [vmem:[#allocation2 + $0x10] sm:$0xff] %v915
    %v917 = vld [vmem:[#allocation3 + $0x18] sm:$0xff]
    %v918 = vld [vmem:[#allocation3 + $0x20] sm:$0xff]
    %v919 = vsel %vm123, %v917, %v918
    %920 = vst [vmem:[#allocation2 + $0x18] sm:$0xff] %v919
    %v921 = vld [vmem:[#allocation3 + $0x20] sm:$0xff]
    %v922 = vld [vmem:[#allocation3 + $0x18] sm:$0xff]
    %v923 = vsel %vm123, %v921, %v922
    %924 = vst [vmem:[#allocation2 + $0x20] sm:$0xff] %v923
    %v925 = vld [vmem:[#allocation3 + $0x28] sm:$0xff]
    %v926 = vld [vmem:[#allocation3 + $0x10] sm:$0xff]
    %v927 = vsel %vm123, %v925, %v926
    %928 = vst [vmem:[#allocation2 + $0x28] sm:$0xff] %v927
    %v929 = vld [vmem:[#allocation3 + $0x30] sm:$0xff]
    %v930 = vld [vmem:[#allocation3 + $0x8] sm:$0xff]
    %v931 = vsel %vm123, %v929, %v930
    %932 = vst [vmem:[#allocation2 + $0x30] sm:$0xff] %v931
    %v933 = vld [vmem:[#allocation3 + $0x38] sm:$0xff]
    %v934 = vld [vmem:[#allocation3] sm:$0xff]
    %v935 = vsel %vm123, %v933, %v934
    %936 = vst [vmem:[#allocation2 + $0x38] sm:$0xff] %v935
    %v937 = vld [vmem:[#allocation2] sm:$0xff]
    %v938 = vld [vmem:[#allocation2 + $0x8] sm:$0xff]
    %v939 = vld [vmem:[#allocation2 + $0x10] sm:$0xff]
    %v940 = vld [vmem:[#allocation2 + $0x18] sm:$0xff]
    %v941 = vld [vmem:[#allocation2 + $0x20] sm:$0xff]
    %v942 = vld [vmem:[#allocation2 + $0x28] sm:$0xff]
    %v943 = vld [vmem:[#allocation2 + $0x30] sm:$0xff]
    %v944 = vld [vmem:[#allocation2 + $0x38] sm:$0xff]
    %v945 = vld [vmem:[%s4] sm:$0xff]
    %v946 = vld [vmem:[%s4 + $0x8] sm:$0xff]
    %v947 = vld [vmem:[%s4 + $0x10] sm:$0xff]
    %v948 = vld [vmem:[%s4 + $0x18] sm:$0xff]
    %v949 = vld [vmem:[%s4 + $0x20] sm:$0xff]
    %v950 = vld [vmem:[%s4 + $0x28] sm:$0xff]
    %v951 = vld [vmem:[%s4 + $0x30] sm:$0xff]
    %v952 = vld [vmem:[%s4 + $0x38] sm:$0xff]
    %v953 = vld [vmem:[%s4 + $0x40] sm:$0xff]
    %v954 = vld [vmem:[%s4 + $0x48] sm:$0xff]
    %v955 = vld [vmem:[%s4 + $0x50] sm:$0xff]
    %v956 = vld [vmem:[%s4 + $0x58] sm:$0xff]
    %v957 = vld [vmem:[%s4 + $0x60] sm:$0xff]
    %v958 = vld [vmem:[%s4 + $0x68] sm:$0xff]
    %v959 = vld [vmem:[%s4 + $0x70] sm:$0xff]
    %v960 = vld [vmem:[%s4 + $0x78] sm:$0xff]
    %v961 = vld [vmem:[#allocation9] sm:$0x1]
    %v963 = vlaneseq
    %v964 = vshrl.u32 %v963, 7
    %v965 = vsub.s32 0, %v964
    %v966 = vrot.slane %v961, %v965
    %968 = vmatprep.subr.mxu0 0.0
    %969 = vmatpush1.msra.mxu0 %v960
    %970 = vmatprep.subr.mxu0 0.0
    %971 = vmatpush1.msra.mxu0 %v959
    %972 = vmatprep.subr.mxu0 0.0
    %973 = vmatpush1.msra.mxu0 %v958
    %974 = vmatprep.subr.mxu0 0.0
    %975 = vmatpush1.msra.mxu0 %v957
    %976 = vmatprep.subr.mxu0 0.0
    %977 = vmatpush1.msra.mxu0 %v956
    %978 = vmatprep.subr.mxu0 0.0
    %979 = vmatpush1.msra.mxu0 %v955
    %980 = vmatprep.subr.mxu0 0.0
    %981 = vmatpush1.msra.mxu0 %v954
    %982 = vmatprep.subr.mxu0 0.0
    %983 = vmatpush1.msra.mxu0 %v953
    %984 = vmatprep.subr.mxu0 0.0
    %985 = vmatpush1.msra.mxu0 %v952
    %986 = vmatprep.subr.mxu0 0.0
    %987 = vmatpush1.msra.mxu0 %v951
    %988 = vmatprep.subr.mxu0 0.0
    %989 = vmatpush1.msra.mxu0 %v950
    %990 = vmatprep.subr.mxu0 0.0
    %991 = vmatpush1.msra.mxu0 %v949
    %992 = vmatprep.subr.mxu0 0.0
    %993 = vmatpush1.msra.mxu0 %v948
    %994 = vmatprep.subr.mxu0 0.0
    %995 = vmatpush1.msra.mxu0 %v947
    %996 = vmatprep.subr.mxu0 0.0
    %997 = vmatpush1.msra.mxu0 %v946
    %998 = vmatprep.subr.mxu0 0.0
    %999 = vmatpush1.msra.mxu0 %v945
    %1000 = vmatprep.subr.mxu0 0.0
    %1001 = vmatpush2.msra.mxu0 0.0
    %1002 = vmatprep.subr.mxu0 0.0
    %1003 = vmatpush2.msra.mxu0 0.0
    %1004 = vmatprep.subr.mxu0 0.0
    %1005 = vmatpush2.msra.mxu0 0.0
    %1006 = vmatprep.subr.mxu0 0.0
    %1007 = vmatpush2.msra.mxu0 0.0
    %1008 = vmatprep.subr.mxu0 0.0
    %1009 = vmatpush2.msra.mxu0 0.0
    %1010 = vmatprep.subr.mxu0 0.0
    %1011 = vmatpush2.msra.mxu0 0.0
    %1012 = vmatprep.subr.mxu0 0.0
    %1013 = vmatpush2.msra.mxu0 0.0
    %1014 = vmatprep.subr.mxu0 0.0
    %1015 = vmatpush2.msra.mxu0 0.0
    %1016 = vmatprep.subr.mxu0 0.0
    %1017 = vmatpush2.msra.mxu0 0.0
    %1018 = vmatprep.subr.mxu0 0.0
    %1019 = vmatpush2.msra.mxu0 0.0
    %1020 = vmatprep.subr.mxu0 0.0
    %1021 = vmatpush2.msra.mxu0 0.0
    %1022 = vmatprep.subr.mxu0 0.0
    %1023 = vmatpush2.msra.mxu0 0.0
    %1024 = vmatprep.subr.mxu0 0.0
    %1025 = vmatpush2.msra.mxu0 0.0
    %1026 = vmatprep.subr.mxu0 0.0
    %1027 = vmatpush2.msra.mxu0 0.0
    %1028 = vmatprep.subr.mxu0 0.0
    %1029 = vmatpush2.msra.mxu0 0.0
    %1030 = vmatprep.subr.mxu0 0.0
    %1031 = vmatpush2.msra.mxu0 0.0
    %1032 = vmatprep.mubr.f32.mxu0 0.0
    %1033 = vmatmul.mubr.f32.gmra.mxu0 %v937
    %v1034 = vpop.f32.mrf.mxu0
    %v1035 = vadd.f32 %v966, %v1034
    %v1036 = vpop.f32.mrf.mxu0
    %1037 = vmatprep.mubr.f32.mxu0 0.0
    %1038 = vmatmul.mubr.f32.gmra.mxu0 %v938
    %v1039 = vpop.f32.mrf.mxu0
    %v1040 = vadd.f32 %v966, %v1039
    %v1041 = vpop.f32.mrf.mxu0
    %1042 = vmatprep.mubr.f32.mxu0 0.0
    %1043 = vmatmul.mubr.f32.gmra.mxu0 %v939
    %v1044 = vpop.f32.mrf.mxu0
    %v1045 = vadd.f32 %v966, %v1044
    %v1046 = vpop.f32.mrf.mxu0
    %1047 = vmatprep.mubr.f32.mxu0 0.0
    %1048 = vmatmul.mubr.f32.gmra.mxu0 %v940
    %v1049 = vpop.f32.mrf.mxu0
    %v1050 = vadd.f32 %v966, %v1049
    %v1051 = vpop.f32.mrf.mxu0
    %1052 = vmatprep.mubr.f32.mxu0 0.0
    %1053 = vmatmul.mubr.f32.gmra.mxu0 %v941
    %v1054 = vpop.f32.mrf.mxu0
    %v1055 = vadd.f32 %v966, %v1054
    %v1056 = vpop.f32.mrf.mxu0
    %1057 = vmatprep.mubr.f32.mxu0 0.0
    %1058 = vmatmul.mubr.f32.gmra.mxu0 %v942
    %v1059 = vpop.f32.mrf.mxu0
    %v1060 = vadd.f32 %v966, %v1059
    %v1061 = vpop.f32.mrf.mxu0
    %1062 = vmatprep.mubr.f32.mxu0 0.0
    %1063 = vmatmul.mubr.f32.gmra.mxu0 %v943
    %v1064 = vpop.f32.mrf.mxu0
    %v1065 = vadd.f32 %v966, %v1064
    %v1066 = vpop.f32.mrf.mxu0
    %1067 = vmatprep.mubr.f32.mxu0 0.0
    %1068 = vmatmul.mubr.f32.gmra.mxu0 %v944
    %v1069 = vpop.f32.mrf.mxu0
    %v1070 = vadd.f32 %v966, %v1069
    %v1071 = vpop.f32.mrf.mxu0
    %1072 = vdwg.mxu0
    %1073 = vst [vmem:[#allocation3] sm:$0xff] %v1035
    %1074 = vst [vmem:[#allocation3 + $0x8] sm:$0xff] %v1040
    %1075 = vst [vmem:[#allocation3 + $0x10] sm:$0xff] %v1045
    %1076 = vst [vmem:[#allocation3 + $0x18] sm:$0xff] %v1050
    %1077 = vst [vmem:[#allocation3 + $0x20] sm:$0xff] %v1055
    %1078 = vst [vmem:[#allocation3 + $0x28] sm:$0xff] %v1060
    %1079 = vst [vmem:[#allocation3 + $0x30] sm:$0xff] %v1065
    %1080 = vst [vmem:[#allocation3 + $0x38] sm:$0xff] %v1070
    %v1081 = vld [vmem:[#allocation11] sm:$0xff]
    %v1082 = vld [vmem:[#allocation11 + $0x8] sm:$0xff]
    %v1083 = vld [vmem:[#allocation11 + $0x10] sm:$0xff]
    %v1084 = vld [vmem:[#allocation11 + $0x18] sm:$0xff]
    %v1085 = vld [vmem:[#allocation11 + $0x20] sm:$0xff]
    %v1086 = vld [vmem:[#allocation11 + $0x28] sm:$0xff]
    %v1087 = vld [vmem:[#allocation11 + $0x30] sm:$0xff]
    %v1088 = vld [vmem:[#allocation11 + $0x38] sm:$0xff]
    %v1089 = vld [vmem:[#allocation11 + $0x40] sm:$0xff]
    %v1090 = vld [vmem:[#allocation11 + $0x48] sm:$0xff]
    %v1091 = vld [vmem:[#allocation11 + $0x50] sm:$0xff]
    %v1092 = vld [vmem:[#allocation11 + $0x58] sm:$0xff]
    %v1093 = vld [vmem:[#allocation11 + $0x60] sm:$0xff]
    %v1094 = vld [vmem:[#allocation11 + $0x68] sm:$0xff]
    %v1095 = vld [vmem:[#allocation11 + $0x70] sm:$0xff]
    %v1096 = vld [vmem:[#allocation11 + $0x78] sm:$0xff]
    %v1097 = vld [vmem:[#allocation3] sm:$0xff]
    %1098 = vmatprep.subr.mxu0 0.0
    %1099 = vmatpush1.msra.mxu0 %v1096
    %1100 = vmatprep.subr.mxu0 0.0
    %1101 = vmatpush1.msra.mxu0 %v1095
    %1102 = vmatprep.subr.mxu0 0.0
    %1103 = vmatpush1.msra.mxu0 %v1094
    %1104 = vmatprep.subr.mxu0 0.0
    %1105 = vmatpush1.msra.mxu0 %v1093
    %1106 = vmatprep.subr.mxu0 0.0
    %1107 = vmatpush1.msra.mxu0 %v1092
    %1108 = vmatprep.subr.mxu0 0.0
    %1109 = vmatpush1.msra.mxu0 %v1091
    %1110 = vmatprep.subr.mxu0 0.0
    %1111 = vmatpush1.msra.mxu0 %v1090
    %1112 = vmatprep.subr.mxu0 0.0
    %1113 = vmatpush1.msra.mxu0 %v1089
    %1114 = vmatprep.subr.mxu0 0.0
    %1115 = vmatpush1.msra.mxu0 %v1088
    %1116 = vmatprep.subr.mxu0 0.0
    %1117 = vmatpush1.msra.mxu0 %v1087
    %1118 = vmatprep.subr.mxu0 0.0
    %1119 = vmatpush1.msra.mxu0 %v1086
    %1120 = vmatprep.subr.mxu0 0.0
    %1121 = vmatpush1.msra.mxu0 %v1085
    %1122 = vmatprep.subr.mxu0 0.0
    %1123 = vmatpush1.msra.mxu0 %v1084
    %1124 = vmatprep.subr.mxu0 0.0
    %1125 = vmatpush1.msra.mxu0 %v1083
    %1126 = vmatprep.subr.mxu0 0.0
    %1127 = vmatpush1.msra.mxu0 %v1082
    %1128 = vmatprep.subr.mxu0 0.0
    %1129 = vmatpush1.msra.mxu0 %v1081
    %1130 = vmatprep.subr.mxu0 0.0
    %1131 = vmatpush2.msra.mxu0 0.0
    %1132 = vmatprep.subr.mxu0 0.0
    %1133 = vmatpush2.msra.mxu0 0.0
    %1134 = vmatprep.subr.mxu0 0.0
    %1135 = vmatpush2.msra.mxu0 0.0
    %1136 = vmatprep.subr.mxu0 0.0
    %1137 = vmatpush2.msra.mxu0 0.0
    %1138 = vmatprep.subr.mxu0 0.0
    %1139 = vmatpush2.msra.mxu0 0.0
    %1140 = vmatprep.subr.mxu0 0.0
    %1141 = vmatpush2.msra.mxu0 0.0
    %1142 = vmatprep.subr.mxu0 0.0
    %1143 = vmatpush2.msra.mxu0 0.0
    %1144 = vmatprep.subr.mxu0 0.0
    %1145 = vmatpush2.msra.mxu0 0.0
    %1146 = vmatprep.subr.mxu0 0.0
    %1147 = vmatpush2.msra.mxu0 0.0
    %1148 = vmatprep.subr.mxu0 0.0
    %1149 = vmatpush2.msra.mxu0 0.0
    %1150 = vmatprep.subr.mxu0 0.0
    %1151 = vmatpush2.msra.mxu0 0.0
    %1152 = vmatprep.subr.mxu0 0.0
    %1153 = vmatpush2.msra.mxu0 0.0
    %1154 = vmatprep.subr.mxu0 0.0
    %1155 = vmatpush2.msra.mxu0 0.0
    %1156 = vmatprep.subr.mxu0 0.0
    %1157 = vmatpush2.msra.mxu0 0.0
    %1158 = vmatprep.subr.mxu0 0.0
    %1159 = vmatpush2.msra.mxu0 0.0
    %1160 = vmatprep.subr.mxu0 0.0
    %1161 = vmatpush2.msra.mxu0 0.0
    %1162 = vmatprep.mubr.f32.mxu0 0.0
    %1163 = vmatmul.mubr.f32.gmra.mxu0 0.0
    %v1164 = vpop.f32.mrf.mxu0
    %v1165 = vadd.f32 0.0, %v1164
    %v1166 = vpop.f32.mrf.mxu0
    %1167 = vdwg.mxu0
    %v1168 = vadd.f32 %v1097, %v1165
    %v1169 = vmax.f32 %v1168, 0.0
    %v1170 = vld [vmem:[#allocation3 + $0x8] sm:$0xff]
    %1171 = vmatprep.subr.mxu0 0.0
    %1172 = vmatpush1.msra.mxu0 %v1096
    %1173 = vmatprep.subr.mxu0 0.0
    %1174 = vmatpush1.msra.mxu0 %v1095
    %1175 = vmatprep.subr.mxu0 0.0
    %1176 = vmatpush1.msra.mxu0 %v1094
    %1177 = vmatprep.subr.mxu0 0.0
    %1178 = vmatpush1.msra.mxu0 %v1093
    %1179 = vmatprep.subr.mxu0 0.0
    %1180 = vmatpush1.msra.mxu0 %v1092
    %1181 = vmatprep.subr.mxu0 0.0
    %1182 = vmatpush1.msra.mxu0 %v1091
    %1183 = vmatprep.subr.mxu0 0.0
    %1184 = vmatpush1.msra.mxu0 %v1090
    %1185 = vmatprep.subr.mxu0 0.0
    %1186 = vmatpush1.msra.mxu0 %v1089
    %1187 = vmatprep.subr.mxu0 0.0
    %1188 = vmatpush1.msra.mxu0 %v1088
    %1189 = vmatprep.subr.mxu0 0.0
    %1190 = vmatpush1.msra.mxu0 %v1087
    %1191 = vmatprep.subr.mxu0 0.0
    %1192 = vmatpush1.msra.mxu0 %v1086
    %1193 = vmatprep.subr.mxu0 0.0
    %1194 = vmatpush1.msra.mxu0 %v1085
    %1195 = vmatprep.subr.mxu0 0.0
    %1196 = vmatpush1.msra.mxu0 %v1084
    %1197 = vmatprep.subr.mxu0 0.0
    %1198 = vmatpush1.msra.mxu0 %v1083
    %1199 = vmatprep.subr.mxu0 0.0
    %1200 = vmatpush1.msra.mxu0 %v1082
    %1201 = vmatprep.subr.mxu0 0.0
    %1202 = vmatpush1.msra.mxu0 %v1081
    %1203 = vmatprep.subr.mxu0 0.0
    %1204 = vmatpush2.msra.mxu0 0.0
    %1205 = vmatprep.subr.mxu0 0.0
    %1206 = vmatpush2.msra.mxu0 0.0
    %1207 = vmatprep.subr.mxu0 0.0
    %1208 = vmatpush2.msra.mxu0 0.0
    %1209 = vmatprep.subr.mxu0 0.0
    %1210 = vmatpush2.msra.mxu0 0.0
    %1211 = vmatprep.subr.mxu0 0.0
    %1212 = vmatpush2.msra.mxu0 0.0
    %1213 = vmatprep.subr.mxu0 0.0
    %1214 = vmatpush2.msra.mxu0 0.0
    %1215 = vmatprep.subr.mxu0 0.0
    %1216 = vmatpush2.msra.mxu0 0.0
    %1217 = vmatprep.subr.mxu0 0.0
    %1218 = vmatpush2.msra.mxu0 0.0
    %1219 = vmatprep.subr.mxu0 0.0
    %1220 = vmatpush2.msra.mxu0 0.0
    %1221 = vmatprep.subr.mxu0 0.0
    %1222 = vmatpush2.msra.mxu0 0.0
    %1223 = vmatprep.subr.mxu0 0.0
    %1224 = vmatpush2.msra.mxu0 0.0
    %1225 = vmatprep.subr.mxu0 0.0
    %1226 = vmatpush2.msra.mxu0 0.0
    %1227 = vmatprep.subr.mxu0 0.0
    %1228 = vmatpush2.msra.mxu0 0.0
    %1229 = vmatprep.subr.mxu0 0.0
    %1230 = vmatpush2.msra.mxu0 0.0
    %1231 = vmatprep.subr.mxu0 0.0
    %1232 = vmatpush2.msra.mxu0 0.0
    %1233 = vmatprep.subr.mxu0 0.0
    %1234 = vmatpush2.msra.mxu0 0.0
    %1235 = vmatprep.mubr.f32.mxu0 0.0
    %1236 = vmatmul.mubr.f32.gmra.mxu0 %v1169
    %v1237 = vpop.f32.mrf.mxu0
    %v1238 = vadd.f32 0.0, %v1237
    %v1239 = vpop.f32.mrf.mxu0
    %1240 = vdwg.mxu0
    %v1241 = vadd.f32 %v1170, %v1238
    %v1242 = vmax.f32 %v1241, 0.0
    %v1243 = vld [vmem:[#allocation3 + $0x10] sm:$0xff]
    %1244 = vmatprep.subr.mxu0 0.0
    %1245 = vmatpush1.msra.mxu0 %v1096
    %1246 = vmatprep.subr.mxu0 0.0
    %1247 = vmatpush1.msra.mxu0 %v1095
    %1248 = vmatprep.subr.mxu0 0.0
    %1249 = vmatpush1.msra.mxu0 %v1094
    %1250 = vmatprep.subr.mxu0 0.0
    %1251 = vmatpush1.msra.mxu0 %v1093
    %1252 = vmatprep.subr.mxu0 0.0
    %1253 = vmatpush1.msra.mxu0 %v1092
    %1254 = vmatprep.subr.mxu0 0.0
    %1255 = vmatpush1.msra.mxu0 %v1091
    %1256 = vmatprep.subr.mxu0 0.0
    %1257 = vmatpush1.msra.mxu0 %v1090
    %1258 = vmatprep.subr.mxu0 0.0
    %1259 = vmatpush1.msra.mxu0 %v1089
    %1260 = vmatprep.subr.mxu0 0.0
    %1261 = vmatpush1.msra.mxu0 %v1088
    %1262 = vmatprep.subr.mxu0 0.0
    %1263 = vmatpush1.msra.mxu0 %v1087
    %1264 = vmatprep.subr.mxu0 0.0
    %1265 = vmatpush1.msra.mxu0 %v1086
    %1266 = vmatprep.subr.mxu0 0.0
    %1267 = vmatpush1.msra.mxu0 %v1085
    %1268 = vmatprep.subr.mxu0 0.0
    %1269 = vmatpush1.msra.mxu0 %v1084
    %1270 = vmatprep.subr.mxu0 0.0
    %1271 = vmatpush1.msra.mxu0 %v1083
    %1272 = vmatprep.subr.mxu0 0.0
    %1273 = vmatpush1.msra.mxu0 %v1082
    %1274 = vmatprep.subr.mxu0 0.0
    %1275 = vmatpush1.msra.mxu0 %v1081
    %1276 = vmatprep.subr.mxu0 0.0
    %1277 = vmatpush2.msra.mxu0 0.0
    %1278 = vmatprep.subr.mxu0 0.0
    %1279 = vmatpush2.msra.mxu0 0.0
    %1280 = vmatprep.subr.mxu0 0.0
    %1281 = vmatpush2.msra.mxu0 0.0
    %1282 = vmatprep.subr.mxu0 0.0
    %1283 = vmatpush2.msra.mxu0 0.0
    %1284 = vmatprep.subr.mxu0 0.0
    %1285 = vmatpush2.msra.mxu0 0.0
    %1286 = vmatprep.subr.mxu0 0.0
    %1287 = vmatpush2.msra.mxu0 0.0
    %1288 = vmatprep.subr.mxu0 0.0
    %1289 = vmatpush2.msra.mxu0 0.0
    %1290 = vmatprep.subr.mxu0 0.0
    %1291 = vmatpush2.msra.mxu0 0.0
    %1292 = vmatprep.subr.mxu0 0.0
    %1293 = vmatpush2.msra.mxu0 0.0
    %1294 = vmatprep.subr.mxu0 0.0
    %1295 = vmatpush2.msra.mxu0 0.0
    %1296 = vmatprep.subr.mxu0 0.0
    %1297 = vmatpush2.msra.mxu0 0.0
    %1298 = vmatprep.subr.mxu0 0.0
    %1299 = vmatpush2.msra.mxu0 0.0
    %1300 = vmatprep.subr.mxu0 0.0
    %1301 = vmatpush2.msra.mxu0 0.0
    %1302 = vmatprep.subr.mxu0 0.0
    %1303 = vmatpush2.msra.mxu0 0.0
    %1304 = vmatprep.subr.mxu0 0.0
    %1305 = vmatpush2.msra.mxu0 0.0
    %1306 = vmatprep.subr.mxu0 0.0
    %1307 = vmatpush2.msra.mxu0 0.0
    %1308 = vmatprep.mubr.f32.mxu0 0.0
    %1309 = vmatmul.mubr.f32.gmra.mxu0 %v1242
    %v1310 = vpop.f32.mrf.mxu0
    %v1311 = vadd.f32 0.0, %v1310
    %v1312 = vpop.f32.mrf.mxu0
    %1313 = vdwg.mxu0
    %v1314 = vadd.f32 %v1243, %v1311
    %v1315 = vmax.f32 %v1314, 0.0
    %v1316 = vld [vmem:[#allocation3 + $0x18] sm:$0xff]
    %1317 = vmatprep.subr.mxu0 0.0
    %1318 = vmatpush1.msra.mxu0 %v1096
    %1319 = vmatprep.subr.mxu0 0.0
    %1320 = vmatpush1.msra.mxu0 %v1095
    %1321 = vmatprep.subr.mxu0 0.0
    %1322 = vmatpush1.msra.mxu0 %v1094
    %1323 = vmatprep.subr.mxu0 0.0
    %1324 = vmatpush1.msra.mxu0 %v1093
    %1325 = vmatprep.subr.mxu0 0.0
    %1326 = vmatpush1.msra.mxu0 %v1092
    %1327 = vmatprep.subr.mxu0 0.0
    %1328 = vmatpush1.msra.mxu0 %v1091
    %1329 = vmatprep.subr.mxu0 0.0
    %1330 = vmatpush1.msra.mxu0 %v1090
    %1331 = vmatprep.subr.mxu0 0.0
    %1332 = vmatpush1.msra.mxu0 %v1089
    %1333 = vmatprep.subr.mxu0 0.0
    %1334 = vmatpush1.msra.mxu0 %v1088
    %1335 = vmatprep.subr.mxu0 0.0
    %1336 = vmatpush1.msra.mxu0 %v1087
    %1337 = vmatprep.subr.mxu0 0.0
    %1338 = vmatpush1.msra.mxu0 %v1086
    %1339 = vmatprep.subr.mxu0 0.0
    %1340 = vmatpush1.msra.mxu0 %v1085
    %1341 = vmatprep.subr.mxu0 0.0
    %1342 = vmatpush1.msra.mxu0 %v1084
    %1343 = vmatprep.subr.mxu0 0.0
    %1344 = vmatpush1.msra.mxu0 %v1083
    %1345 = vmatprep.subr.mxu0 0.0
    %1346 = vmatpush1.msra.mxu0 %v1082
    %1347 = vmatprep.subr.mxu0 0.0
    %1348 = vmatpush1.msra.mxu0 %v1081
    %1349 = vmatprep.subr.mxu0 0.0
    %1350 = vmatpush2.msra.mxu0 0.0
    %1351 = vmatprep.subr.mxu0 0.0
    %1352 = vmatpush2.msra.mxu0 0.0
    %1353 = vmatprep.subr.mxu0 0.0
    %1354 = vmatpush2.msra.mxu0 0.0
    %1355 = vmatprep.subr.mxu0 0.0
    %1356 = vmatpush2.msra.mxu0 0.0
    %1357 = vmatprep.subr.mxu0 0.0
    %1358 = vmatpush2.msra.mxu0 0.0
    %1359 = vmatprep.subr.mxu0 0.0
    %1360 = vmatpush2.msra.mxu0 0.0
    %1361 = vmatprep.subr.mxu0 0.0
    %1362 = vmatpush2.msra.mxu0 0.0
    %1363 = vmatprep.subr.mxu0 0.0
    %1364 = vmatpush2.msra.mxu0 0.0
    %1365 = vmatprep.subr.mxu0 0.0
    %1366 = vmatpush2.msra.mxu0 0.0
    %1367 = vmatprep.subr.mxu0 0.0
    %1368 = vmatpush2.msra.mxu0 0.0
    %1369 = vmatprep.subr.mxu0 0.0
    %1370 = vmatpush2.msra.mxu0 0.0
    %1371 = vmatprep.subr.mxu0 0.0
    %1372 = vmatpush2.msra.mxu0 0.0
    %1373 = vmatprep.subr.mxu0 0.0
    %1374 = vmatpush2.msra.mxu0 0.0
    %1375 = vmatprep.subr.mxu0 0.0
    %1376 = vmatpush2.msra.mxu0 0.0
    %1377 = vmatprep.subr.mxu0 0.0
    %1378 = vmatpush2.msra.mxu0 0.0
    %1379 = vmatprep.subr.mxu0 0.0
    %1380 = vmatpush2.msra.mxu0 0.0
    %1381 = vmatprep.mubr.f32.mxu0 0.0
    %1382 = vmatmul.mubr.f32.gmra.mxu0 %v1315
    %v1383 = vpop.f32.mrf.mxu0
    %v1384 = vadd.f32 0.0, %v1383
    %v1385 = vpop.f32.mrf.mxu0
    %1386 = vdwg.mxu0
    %v1387 = vadd.f32 %v1316, %v1384
    %v1388 = vmax.f32 %v1387, 0.0
    %v1389 = vld [vmem:[#allocation3 + $0x20] sm:$0xff]
    %1390 = vmatprep.subr.mxu0 0.0
    %1391 = vmatpush1.msra.mxu0 %v1096
    %1392 = vmatprep.subr.mxu0 0.0
    %1393 = vmatpush1.msra.mxu0 %v1095
    %1394 = vmatprep.subr.mxu0 0.0
    %1395 = vmatpush1.msra.mxu0 %v1094
    %1396 = vmatprep.subr.mxu0 0.0
    %1397 = vmatpush1.msra.mxu0 %v1093
    %1398 = vmatprep.subr.mxu0 0.0
    %1399 = vmatpush1.msra.mxu0 %v1092
    %1400 = vmatprep.subr.mxu0 0.0
    %1401 = vmatpush1.msra.mxu0 %v1091
    %1402 = vmatprep.subr.mxu0 0.0
    %1403 = vmatpush1.msra.mxu0 %v1090
    %1404 = vmatprep.subr.mxu0 0.0
    %1405 = vmatpush1.msra.mxu0 %v1089
    %1406 = vmatprep.subr.mxu0 0.0
    %1407 = vmatpush1.msra.mxu0 %v1088
    %1408 = vmatprep.subr.mxu0 0.0
    %1409 = vmatpush1.msra.mxu0 %v1087
    %1410 = vmatprep.subr.mxu0 0.0
    %1411 = vmatpush1.msra.mxu0 %v1086
    %1412 = vmatprep.subr.mxu0 0.0
    %1413 = vmatpush1.msra.mxu0 %v1085
    %1414 = vmatprep.subr.mxu0 0.0
    %1415 = vmatpush1.msra.mxu0 %v1084
    %1416 = vmatprep.subr.mxu0 0.0
    %1417 = vmatpush1.msra.mxu0 %v1083
    %1418 = vmatprep.subr.mxu0 0.0
    %1419 = vmatpush1.msra.mxu0 %v1082
    %1420 = vmatprep.subr.mxu0 0.0
    %1421 = vmatpush1.msra.mxu0 %v1081
    %1422 = vmatprep.subr.mxu0 0.0
    %1423 = vmatpush2.msra.mxu0 0.0
    %1424 = vmatprep.subr.mxu0 0.0
    %1425 = vmatpush2.msra.mxu0 0.0
    %1426 = vmatprep.subr.mxu0 0.0
    %1427 = vmatpush2.msra.mxu0 0.0
    %1428 = vmatprep.subr.mxu0 0.0
    %1429 = vmatpush2.msra.mxu0 0.0
    %1430 = vmatprep.subr.mxu0 0.0
    %1431 = vmatpush2.msra.mxu0 0.0
    %1432 = vmatprep.subr.mxu0 0.0
    %1433 = vmatpush2.msra.mxu0 0.0
    %1434 = vmatprep.subr.mxu0 0.0
    %1435 = vmatpush2.msra.mxu0 0.0
    %1436 = vmatprep.subr.mxu0 0.0
    %1437 = vmatpush2.msra.mxu0 0.0
    %1438 = vmatprep.subr.mxu0 0.0
    %1439 = vmatpush2.msra.mxu0 0.0
    %1440 = vmatprep.subr.mxu0 0.0
    %1441 = vmatpush2.msra.mxu0 0.0
    %1442 = vmatprep.subr.mxu0 0.0
    %1443 = vmatpush2.msra.mxu0 0.0
    %1444 = vmatprep.subr.mxu0 0.0
    %1445 = vmatpush2.msra.mxu0 0.0
    %1446 = vmatprep.subr.mxu0 0.0
    %1447 = vmatpush2.msra.mxu0 0.0
    %1448 = vmatprep.subr.mxu0 0.0
    %1449 = vmatpush2.msra.mxu0 0.0
    %1450 = vmatprep.subr.mxu0 0.0
    %1451 = vmatpush2.msra.mxu0 0.0
    %1452 = vmatprep.subr.mxu0 0.0
    %1453 = vmatpush2.msra.mxu0 0.0
    %1454 = vmatprep.mubr.f32.mxu0 0.0
    %1455 = vmatmul.mubr.f32.gmra.mxu0 %v1388
    %v1456 = vpop.f32.mrf.mxu0
    %v1457 = vadd.f32 0.0, %v1456
    %v1458 = vpop.f32.mrf.mxu0
    %1459 = vdwg.mxu0
    %v1460 = vadd.f32 %v1389, %v1457
    %v1461 = vmax.f32 %v1460, 0.0
    %v1462 = vld [vmem:[#allocation3 + $0x28] sm:$0xff]
    %1463 = vmatprep.subr.mxu0 0.0
    %1464 = vmatpush1.msra.mxu0 %v1096
    %1465 = vmatprep.subr.mxu0 0.0
    %1466 = vmatpush1.msra.mxu0 %v1095
    %1467 = vmatprep.subr.mxu0 0.0
    %1468 = vmatpush1.msra.mxu0 %v1094
    %1469 = vmatprep.subr.mxu0 0.0
    %1470 = vmatpush1.msra.mxu0 %v1093
    %1471 = vmatprep.subr.mxu0 0.0
    %1472 = vmatpush1.msra.mxu0 %v1092
    %1473 = vmatprep.subr.mxu0 0.0
    %1474 = vmatpush1.msra.mxu0 %v1091
    %1475 = vmatprep.subr.mxu0 0.0
    %1476 = vmatpush1.msra.mxu0 %v1090
    %1477 = vmatprep.subr.mxu0 0.0
    %1478 = vmatpush1.msra.mxu0 %v1089
    %1479 = vmatprep.subr.mxu0 0.0
    %1480 = vmatpush1.msra.mxu0 %v1088
    %1481 = vmatprep.subr.mxu0 0.0
    %1482 = vmatpush1.msra.mxu0 %v1087
    %1483 = vmatprep.subr.mxu0 0.0
    %1484 = vmatpush1.msra.mxu0 %v1086
    %1485 = vmatprep.subr.mxu0 0.0
    %1486 = vmatpush1.msra.mxu0 %v1085
    %1487 = vmatprep.subr.mxu0 0.0
    %1488 = vmatpush1.msra.mxu0 %v1084
    %1489 = vmatprep.subr.mxu0 0.0
    %1490 = vmatpush1.msra.mxu0 %v1083
    %1491 = vmatprep.subr.mxu0 0.0
    %1492 = vmatpush1.msra.mxu0 %v1082
    %1493 = vmatprep.subr.mxu0 0.0
    %1494 = vmatpush1.msra.mxu0 %v1081
    %1495 = vmatprep.subr.mxu0 0.0
    %1496 = vmatpush2.msra.mxu0 0.0
    %1497 = vmatprep.subr.mxu0 0.0
    %1498 = vmatpush2.msra.mxu0 0.0
    %1499 = vmatprep.subr.mxu0 0.0
    %1500 = vmatpush2.msra.mxu0 0.0
    %1501 = vmatprep.subr.mxu0 0.0
    %1502 = vmatpush2.msra.mxu0 0.0
    %1503 = vmatprep.subr.mxu0 0.0
    %1504 = vmatpush2.msra.mxu0 0.0
    %1505 = vmatprep.subr.mxu0 0.0
    %1506 = vmatpush2.msra.mxu0 0.0
    %1507 = vmatprep.subr.mxu0 0.0
    %1508 = vmatpush2.msra.mxu0 0.0
    %1509 = vmatprep.subr.mxu0 0.0
    %1510 = vmatpush2.msra.mxu0 0.0
    %1511 = vmatprep.subr.mxu0 0.0
    %1512 = vmatpush2.msra.mxu0 0.0
    %1513 = vmatprep.subr.mxu0 0.0
    %1514 = vmatpush2.msra.mxu0 0.0
    %1515 = vmatprep.subr.mxu0 0.0
    %1516 = vmatpush2.msra.mxu0 0.0
    %1517 = vmatprep.subr.mxu0 0.0
    %1518 = vmatpush2.msra.mxu0 0.0
    %1519 = vmatprep.subr.mxu0 0.0
    %1520 = vmatpush2.msra.mxu0 0.0
    %1521 = vmatprep.subr.mxu0 0.0
    %1522 = vmatpush2.msra.mxu0 0.0
    %1523 = vmatprep.subr.mxu0 0.0
    %1524 = vmatpush2.msra.mxu0 0.0
    %1525 = vmatprep.subr.mxu0 0.0
    %1526 = vmatpush2.msra.mxu0 0.0
    %1527 = vmatprep.mubr.f32.mxu0 0.0
    %1528 = vmatmul.mubr.f32.gmra.mxu0 %v1461
    %v1529 = vpop.f32.mrf.mxu0
    %v1530 = vadd.f32 0.0, %v1529
    %v1531 = vpop.f32.mrf.mxu0
    %1532 = vdwg.mxu0
    %v1533 = vadd.f32 %v1462, %v1530
    %v1534 = vmax.f32 %v1533, 0.0
    %v1535 = vld [vmem:[#allocation3 + $0x30] sm:$0xff]
    %1536 = vmatprep.subr.mxu0 0.0
    %1537 = vmatpush1.msra.mxu0 %v1096
    %1538 = vmatprep.subr.mxu0 0.0
    %1539 = vmatpush1.msra.mxu0 %v1095
    %1540 = vmatprep.subr.mxu0 0.0
    %1541 = vmatpush1.msra.mxu0 %v1094
    %1542 = vmatprep.subr.mxu0 0.0
    %1543 = vmatpush1.msra.mxu0 %v1093
    %1544 = vmatprep.subr.mxu0 0.0
    %1545 = vmatpush1.msra.mxu0 %v1092
    %1546 = vmatprep.subr.mxu0 0.0
    %1547 = vmatpush1.msra.mxu0 %v1091
    %1548 = vmatprep.subr.mxu0 0.0
    %1549 = vmatpush1.msra.mxu0 %v1090
    %1550 = vmatprep.subr.mxu0 0.0
    %1551 = vmatpush1.msra.mxu0 %v1089
    %1552 = vmatprep.subr.mxu0 0.0
    %1553 = vmatpush1.msra.mxu0 %v1088
    %1554 = vmatprep.subr.mxu0 0.0
    %1555 = vmatpush1.msra.mxu0 %v1087
    %1556 = vmatprep.subr.mxu0 0.0
    %1557 = vmatpush1.msra.mxu0 %v1086
    %1558 = vmatprep.subr.mxu0 0.0
    %1559 = vmatpush1.msra.mxu0 %v1085
    %1560 = vmatprep.subr.mxu0 0.0
    %1561 = vmatpush1.msra.mxu0 %v1084
    %1562 = vmatprep.subr.mxu0 0.0
    %1563 = vmatpush1.msra.mxu0 %v1083
    %1564 = vmatprep.subr.mxu0 0.0
    %1565 = vmatpush1.msra.mxu0 %v1082
    %1566 = vmatprep.subr.mxu0 0.0
    %1567 = vmatpush1.msra.mxu0 %v1081
    %1568 = vmatprep.subr.mxu0 0.0
    %1569 = vmatpush2.msra.mxu0 0.0
    %1570 = vmatprep.subr.mxu0 0.0
    %1571 = vmatpush2.msra.mxu0 0.0
    %1572 = vmatprep.subr.mxu0 0.0
    %1573 = vmatpush2.msra.mxu0 0.0
    %1574 = vmatprep.subr.mxu0 0.0
    %1575 = vmatpush2.msra.mxu0 0.0
    %1576 = vmatprep.subr.mxu0 0.0
    %1577 = vmatpush2.msra.mxu0 0.0
    %1578 = vmatprep.subr.mxu0 0.0
    %1579 = vmatpush2.msra.mxu0 0.0
    %1580 = vmatprep.subr.mxu0 0.0
    %1581 = vmatpush2.msra.mxu0 0.0
    %1582 = vmatprep.subr.mxu0 0.0
    %1583 = vmatpush2.msra.mxu0 0.0
    %1584 = vmatprep.subr.mxu0 0.0
    %1585 = vmatpush2.msra.mxu0 0.0
    %1586 = vmatprep.subr.mxu0 0.0
    %1587 = vmatpush2.msra.mxu0 0.0
    %1588 = vmatprep.subr.mxu0 0.0
    %1589 = vmatpush2.msra.mxu0 0.0
    %1590 = vmatprep.subr.mxu0 0.0
    %1591 = vmatpush2.msra.mxu0 0.0
    %1592 = vmatprep.subr.mxu0 0.0
    %1593 = vmatpush2.msra.mxu0 0.0
    %1594 = vmatprep.subr.mxu0 0.0
    %1595 = vmatpush2.msra.mxu0 0.0
    %1596 = vmatprep.subr.mxu0 0.0
    %1597 = vmatpush2.msra.mxu0 0.0
    %1598 = vmatprep.subr.mxu0 0.0
    %1599 = vmatpush2.msra.mxu0 0.0
    %1600 = vmatprep.mubr.f32.mxu0 0.0
    %1601 = vmatmul.mubr.f32.gmra.mxu0 %v1534
    %v1602 = vpop.f32.mrf.mxu0
    %v1603 = vadd.f32 0.0, %v1602
    %v1604 = vpop.f32.mrf.mxu0
    %1605 = vdwg.mxu0
    %v1606 = vadd.f32 %v1535, %v1603
    %v1607 = vmax.f32 %v1606, 0.0
    %v1608 = vld [vmem:[#allocation3 + $0x38] sm:$0xff]
    %1609 = vmatprep.subr.mxu0 0.0
    %1610 = vmatpush1.msra.mxu0 %v1096
    %1611 = vmatprep.subr.mxu0 0.0
    %1612 = vmatpush1.msra.mxu0 %v1095
    %1613 = vmatprep.subr.mxu0 0.0
    %1614 = vmatpush1.msra.mxu0 %v1094
    %1615 = vmatprep.subr.mxu0 0.0
    %1616 = vmatpush1.msra.mxu0 %v1093
    %1617 = vmatprep.subr.mxu0 0.0
    %1618 = vmatpush1.msra.mxu0 %v1092
    %1619 = vmatprep.subr.mxu0 0.0
    %1620 = vmatpush1.msra.mxu0 %v1091
    %1621 = vmatprep.subr.mxu0 0.0
    %1622 = vmatpush1.msra.mxu0 %v1090
    %1623 = vmatprep.subr.mxu0 0.0
    %1624 = vmatpush1.msra.mxu0 %v1089
    %1625 = vmatprep.subr.mxu0 0.0
    %1626 = vmatpush1.msra.mxu0 %v1088
    %1627 = vmatprep.subr.mxu0 0.0
    %1628 = vmatpush1.msra.mxu0 %v1087
    %1629 = vmatprep.subr.mxu0 0.0
    %1630 = vmatpush1.msra.mxu0 %v1086
    %1631 = vmatprep.subr.mxu0 0.0
    %1632 = vmatpush1.msra.mxu0 %v1085
    %1633 = vmatprep.subr.mxu0 0.0
    %1634 = vmatpush1.msra.mxu0 %v1084
    %1635 = vmatprep.subr.mxu0 0.0
    %1636 = vmatpush1.msra.mxu0 %v1083
    %1637 = vmatprep.subr.mxu0 0.0
    %1638 = vmatpush1.msra.mxu0 %v1082
    %1639 = vmatprep.subr.mxu0 0.0
    %1640 = vmatpush1.msra.mxu0 %v1081
    %1641 = vmatprep.subr.mxu0 0.0
    %1642 = vmatpush2.msra.mxu0 0.0
    %1643 = vmatprep.subr.mxu0 0.0
    %1644 = vmatpush2.msra.mxu0 0.0
    %1645 = vmatprep.subr.mxu0 0.0
    %1646 = vmatpush2.msra.mxu0 0.0
    %1647 = vmatprep.subr.mxu0 0.0
    %1648 = vmatpush2.msra.mxu0 0.0
    %1649 = vmatprep.subr.mxu0 0.0
    %1650 = vmatpush2.msra.mxu0 0.0
    %1651 = vmatprep.subr.mxu0 0.0
    %1652 = vmatpush2.msra.mxu0 0.0
    %1653 = vmatprep.subr.mxu0 0.0
    %1654 = vmatpush2.msra.mxu0 0.0
    %1655 = vmatprep.subr.mxu0 0.0
    %1656 = vmatpush2.msra.mxu0 0.0
    %1657 = vmatprep.subr.mxu0 0.0
    %1658 = vmatpush2.msra.mxu0 0.0
    %1659 = vmatprep.subr.mxu0 0.0
    %1660 = vmatpush2.msra.mxu0 0.0
    %1661 = vmatprep.subr.mxu0 0.0
    %1662 = vmatpush2.msra.mxu0 0.0
    %1663 = vmatprep.subr.mxu0 0.0
    %1664 = vmatpush2.msra.mxu0 0.0
    %1665 = vmatprep.subr.mxu0 0.0
    %1666 = vmatpush2.msra.mxu0 0.0
    %1667 = vmatprep.subr.mxu0 0.0
    %1668 = vmatpush2.msra.mxu0 0.0
    %1669 = vmatprep.subr.mxu0 0.0
    %1670 = vmatpush2.msra.mxu0 0.0
    %1671 = vmatprep.subr.mxu0 0.0
    %1672 = vmatpush2.msra.mxu0 0.0
    %1673 = vmatprep.mubr.f32.mxu0 0.0
    %1674 = vmatmul.mubr.f32.gmra.mxu0 %v1607
    %v1675 = vpop.f32.mrf.mxu0
    %v1676 = vadd.f32 0.0, %v1675
    %v1677 = vpop.f32.mrf.mxu0
    %1678 = vdwg.mxu0
    %v1679 = vadd.f32 %v1608, %v1676
    %v1680 = vmax.f32 %v1679, 0.0
    %v1681 = vld [vmem:[#allocation12] sm:$0xff]
    %v1682 = vld [vmem:[#allocation12 + $0x8] sm:$0xff]
    %v1683 = vld [vmem:[#allocation12 + $0x10] sm:$0xff]
    %v1684 = vld [vmem:[#allocation12 + $0x18] sm:$0xff]
    %v1685 = vld [vmem:[#allocation12 + $0x20] sm:$0xff]
    %v1686 = vld [vmem:[#allocation12 + $0x28] sm:$0xff]
    %v1687 = vld [vmem:[#allocation12 + $0x30] sm:$0xff]
    %v1688 = vld [vmem:[#allocation12 + $0x38] sm:$0xff]
    %v1689 = vld [vmem:[#allocation12 + $0x40] sm:$0xff]
    %v1690 = vld [vmem:[#allocation12 + $0x48] sm:$0xff]
    %v1691 = vld [vmem:[#allocation12 + $0x50] sm:$0xff]
    %v1692 = vld [vmem:[#allocation12 + $0x58] sm:$0xff]
    %v1693 = vld [vmem:[#allocation12 + $0x60] sm:$0xff]
    %v1694 = vld [vmem:[#allocation12 + $0x68] sm:$0xff]
    %v1695 = vld [vmem:[#allocation12 + $0x70] sm:$0xff]
    %v1696 = vld [vmem:[#allocation12 + $0x78] sm:$0xff]
    %v1697 = vld [vmem:[#allocation14] sm:$0x1]
    %v1699 = vlaneseq
    %v1700 = vshrl.u32 %v1699, 7
    %v1701 = vsub.s32 0, %v1700
    %v1702 = vrot.slane %v1697, %v1701
    %1704 = vmatprep.subr.mxu0 0.0
    %1705 = vmatpush1.msra.mxu0 %v1696
    %1706 = vmatprep.subr.mxu0 0.0
    %1707 = vmatpush1.msra.mxu0 %v1695
    %1708 = vmatprep.subr.mxu0 0.0
    %1709 = vmatpush1.msra.mxu0 %v1694
    %1710 = vmatprep.subr.mxu0 0.0
    %1711 = vmatpush1.msra.mxu0 %v1693
    %1712 = vmatprep.subr.mxu0 0.0
    %1713 = vmatpush1.msra.mxu0 %v1692
    %1714 = vmatprep.subr.mxu0 0.0
    %1715 = vmatpush1.msra.mxu0 %v1691
    %1716 = vmatprep.subr.mxu0 0.0
    %1717 = vmatpush1.msra.mxu0 %v1690
    %1718 = vmatprep.subr.mxu0 0.0
    %1719 = vmatpush1.msra.mxu0 %v1689
    %1720 = vmatprep.subr.mxu0 0.0
    %1721 = vmatpush1.msra.mxu0 %v1688
    %1722 = vmatprep.subr.mxu0 0.0
    %1723 = vmatpush1.msra.mxu0 %v1687
    %1724 = vmatprep.subr.mxu0 0.0
    %1725 = vmatpush1.msra.mxu0 %v1686
    %1726 = vmatprep.subr.mxu0 0.0
    %1727 = vmatpush1.msra.mxu0 %v1685
    %1728 = vmatprep.subr.mxu0 0.0
    %1729 = vmatpush1.msra.mxu0 %v1684
    %1730 = vmatprep.subr.mxu0 0.0
    %1731 = vmatpush1.msra.mxu0 %v1683
    %1732 = vmatprep.subr.mxu0 0.0
    %1733 = vmatpush1.msra.mxu0 %v1682
    %1734 = vmatprep.subr.mxu0 0.0
    %1735 = vmatpush1.msra.mxu0 %v1681
    %1736 = vmatprep.subr.mxu0 0.0
    %1737 = vmatpush2.msra.mxu0 0.0
    %1738 = vmatprep.subr.mxu0 0.0
    %1739 = vmatpush2.msra.mxu0 0.0
    %1740 = vmatprep.subr.mxu0 0.0
    %1741 = vmatpush2.msra.mxu0 0.0
    %1742 = vmatprep.subr.mxu0 0.0
    %1743 = vmatpush2.msra.mxu0 0.0
    %1744 = vmatprep.subr.mxu0 0.0
    %1745 = vmatpush2.msra.mxu0 0.0
    %1746 = vmatprep.subr.mxu0 0.0
    %1747 = vmatpush2.msra.mxu0 0.0
    %1748 = vmatprep.subr.mxu0 0.0
    %1749 = vmatpush2.msra.mxu0 0.0
    %1750 = vmatprep.subr.mxu0 0.0
    %1751 = vmatpush2.msra.mxu0 0.0
    %1752 = vmatprep.subr.mxu0 0.0
    %1753 = vmatpush2.msra.mxu0 0.0
    %1754 = vmatprep.subr.mxu0 0.0
    %1755 = vmatpush2.msra.mxu0 0.0
    %1756 = vmatprep.subr.mxu0 0.0
    %1757 = vmatpush2.msra.mxu0 0.0
    %1758 = vmatprep.subr.mxu0 0.0
    %1759 = vmatpush2.msra.mxu0 0.0
    %1760 = vmatprep.subr.mxu0 0.0
    %1761 = vmatpush2.msra.mxu0 0.0
    %1762 = vmatprep.subr.mxu0 0.0
    %1763 = vmatpush2.msra.mxu0 0.0
    %1764 = vmatprep.subr.mxu0 0.0
    %1765 = vmatpush2.msra.mxu0 0.0
    %1766 = vmatprep.subr.mxu0 0.0
    %1767 = vmatpush2.msra.mxu0 0.0
    %1768 = vmatprep.mubr.f32.mxu0 0.0
    %1769 = vmatmul.mubr.f32.gmra.mxu0 %v1680
    %v1770 = vpop.f32.mrf.mxu0
    %v1771 = vadd.f32 %v1702, %v1770
    %v1772 = vpop.f32.mrf.mxu0
    %1773 = vdwg.mxu0
    %v1774 = vmax.f32 %v1771, 0.0
    %v1775 = vand.u32 2147483647, %v1771
    %v1776 = vsub.f32 0.0, %v1775
    %v1777 = vmul.f32 %v1776, 1.442695
    %v1778 = vpow.pop %v1777
    %v1779 = vadd.f32 %v1778, 1.0
    %v1780 = vlog2.pop %v1779
    %v1781 = vmul.f32 %v1780, 0.6931472
    %v1782 = vadd.f32 %v1774, %v1781
    %v1783 = vadd.f32 %v1782, 0.0001
    %vm1784 = vcmp.ge.s32.totalorder %v122, 16
    %v1785 = vsel %vm1784, %v1783, %v1771
    %1786 = vst [vmem:[%s9] sm:$0xff] %v1785
    // Predicated region
    $region66: #{plan_recognition_forward.1} parent=1 // pred_check
      _
    $region67: #{plan_recognition_forward.1} parent=1 // pred_check_branch
      %1788 = sbr.rel (0) target = $region69
    $region68: #{plan_recognition_forward.1} parent=1 // pred_region
      _
    $region69: #{plan_recognition_forward.1} parent=1 // pred_fallthru
      _
    // Predicated region
    $region70: #{plan_recognition_forward.1} parent=1 // pred_check
      _
    $region71: #{plan_recognition_forward.1} parent=1 // pred_check_branch
      %1790 = sbr.rel (0) target = $region73
    $region72: #{plan_recognition_forward.1} parent=1 // pred_region
      _
    $region73: #{plan_recognition_forward.1} parent=1 // pred_fallthru
      _
    %1791 = vsyncpa [#allocation5], 1
    %1792 = vsyncpa [#allocation7], 1
    %1793 = vsyncpa [#allocation10], 1
    %1794 = vsyncpa [#allocation13], 1

</llo_original>
